<compile_context>
chip_gen: v7x
topology: tpu7x:2x2x1
jax: 0.10.0
libtpu: 0.0.40
codegen_flags: <defaults>
</compile_context>

<pallas_src>
import functools

import jax
import jax.numpy as jnp
import numpy as np
from jax import lax
from jax.experimental import pallas as pl
from jax.experimental.pallas import tpu as pltpu

EPS = 1e-8


def _round_up(x, m):
    return (x + m - 1) // m * m


def _vsa_kernel(cap_lens_ref, img_lens_ref, imgs_ref, caps_ref, gram_ref,
                out_ref, *, temperature):
    # cap_lens_ref : (BT, 1, 1) int32   caption tile lengths
    # img_lens_ref : (IT, 1, 1) int32   image tile lengths
    # imgs_ref     : (IT, R_pad, D)     image tile regions (native/mxu dtype)
    # caps_ref     : (BT, W_pad, D)     caption tile       (native/mxu dtype)
    # gram_ref     : (BT, W_pad, W_pad) per-caption Gram matrices caps @ caps^T
    # out_ref      : (IT, R_pad, BT) f32  result, captions on the lane axis
    it, r_pad, d = imgs_ref.shape
    bt, w_pad, _ = caps_ref.shape
    rp = it * r_pad

    # Flatten the image tile so the MXU N dim / lane axis is R' = IT*R_pad.
    # (last dim unchanged, leading sublane dims merge -> free reshape)
    img_flat = imgs_ref[...].reshape(rp, d)                 # (R', D)
    caps = caps_ref[...]                                    # (BT, W, D)

    # Region-word similarities, f32-accumulated on the MXU, scaled by 1/T in
    # place (no separate `s` temporary; `num` recovers the factor T below).
    s = lax.dot_general(caps, img_flat, (((2,), (1,)), ((), ())),
                        preferred_element_type=jnp.float32)  # (BT, W, R')
    s = s * jnp.float32(1.0 / temperature)

    # Word mask (w < cap_lens[c]); masked softmax over words (axis=1), f32.
    w_idx = lax.broadcasted_iota(jnp.int32, (bt, w_pad, 1), 1)
    wmask = w_idx < cap_lens_ref[...]                        # (BT, W, 1)

    s = jnp.where(wmask, s, -1e30)
    m = jnp.max(s, axis=1, keepdims=True)                    # (BT, 1, R')
    e = jnp.where(wmask, jnp.exp(s - m), 0.0)                # (BT, W, R')
    denom = jnp.sum(e, axis=1, keepdims=True)                # (BT, 1, R')
    # EUP approx reciprocal: the per-(c,r) scale error r cancels in num/nrm
    # up to the EPS term (res = r*num/(r*nrm + EPS)); negligible for nrm>>EPS.
    p = e * pl.reciprocal(denom, approx=True)                # (BT, W, R')

    # num = <att, img> = T * sum_w p * s ; nrm2 = ||att||^2 = p^T G p.
    num = jnp.sum(p * s, axis=1) * jnp.float32(temperature)  # (BT, R')
    gp = lax.dot_general(gram_ref[...], p.astype(gram_ref.dtype),
                         (((2,), (1,)), ((0,), (0,))),
                         preferred_element_type=jnp.float32)  # (BT, W, R')
    nrm2 = jnp.sum(p * gp, axis=1)                            # (BT, R')
    res = num / (jnp.sqrt(jnp.maximum(nrm2, 0.0)) + EPS)      # (BT, R')

    # Lane-dense store: captions on the lane axis. (R',BT) -> (IT,R_pad,BT)
    # keeps lanes intact (free reshape). Regions beyond img_lens -> -1.
    res3 = res.T.reshape(it, r_pad, bt)
    r_idx = lax.broadcasted_iota(jnp.int32, (it, r_pad, 1), 1)
    res3 = jnp.where(r_idx < img_lens_ref[...], res3, -1.0)
    out_ref[...] = res3.astype(out_ref.dtype)


def vsa_coding(imgs, caps, img_lens, cap_lens, temperature=0.1,
               cap_tile=128, img_lane_target=256, mxu_dtype=None):
    """Pallas TPU implementation of VSACoding.forward (return_attn=False)."""
    img_lens = jnp.asarray(img_lens, jnp.int32)
    cap_lens = jnp.asarray(cap_lens, jnp.int32)

    # Host-side crop to max valid lengths (mirrors the torch forward).
    # TODO(synk): pad to fixed length buckets to avoid the device sync and
    # per-shape recompiles if this runs in a hot loop.
    max_r = int(jax.device_get(jnp.max(img_lens)))
    max_w = int(jax.device_get(jnp.max(cap_lens)))
    if imgs.ndim == 2:
        imgs = imgs[:, None, :]
    if caps.ndim == 2:
        caps = caps[:, None, :]
    imgs = imgs[:, :max_r, :]
    caps = caps[:, :max_w, :]

    Bi, R, D = imgs.shape
    Bt, W, _ = caps.shape

    cap_dtype = mxu_dtype if mxu_dtype is not None else caps.dtype
    img_dtype = mxu_dtype if mxu_dtype is not None else imgs.dtype
    cap_isz = jnp.dtype(cap_dtype).itemsize
    img_isz = jnp.dtype(img_dtype).itemsize

    # Sublane pack per dtype: f32 -> 8 rows, bf16 -> 16, int8/fp8 -> 32.
    pack = {4: 8, 2: 16, 1: 32}.get(cap_isz, 8)
    R_pad = _round_up(max(R, 8), 8)
    W_pad = _round_up(max(W, pack), pack)

    # Caption tile: multiple of 128 in production (lane-dense stores); tiny
    # batches (tests) fall back to a multiple of 8 / full array.
    bt_tile = min(int(cap_tile), _round_up(Bt, 8))
    if bt_tile >= 128:
        bt_tile = _round_up(bt_tile, 128)

    # Image tile: block IMG_TILE images per grid step so the lane axis of
    # every intermediate (and the MXU N dim) is ~img_lane_target wide.
    want = max(1, int(img_lane_target) // R_pad)
    n_img_tiles = pl.cdiv(Bi, want) if want < Bi else 1
    img_tile = pl.cdiv(Bi, n_img_tiles)

    # ---- VMEM footprint (lane-padded, double-buffering counted once) ----
    def _footprint(bt, it):
        rl = _round_up(it * R_pad, 128)    # lane width of intermediates
        wl = _round_up(W_pad, 128)         # lane width of gram blocks
        btl = _round_up(bt, 128)           # lane width of output blocks
        blk = (2 * bt * W_pad * D * cap_isz          # caps   (2 buffers)
               + 2 * bt * W_pad * wl * 4             # gram   (2 buffers)
               + 2 * it * R_pad * D * img_isz        # imgs   (2 buffers)
               + 2 * it * R_pad * btl * 4            # out    (2 buffers)
               + 2 * (bt + it) * 128 * 4)            # length vectors
        tmp = (5 * bt * W_pad * rl * 4               # s/e/p/gp + slack
               + 4 * bt * rl * 4                     # m/denom/num/nrm2
               + it * R_pad * btl * 4)               # store staging
        return blk + tmp

    try:
        vmem_cap = int(pltpu.get_tpu_info().vmem_capacity_bytes)
    except Exception:  # pragma: no cover - conservative fallback (v7x size)
        vmem_cap = 64 << 20
    budget = int(vmem_cap * 0.875)         # headroom for compiler scratch

    # Auto-shrink tiles until the footprint fits (v7x: 64 MiB / TensorCore).
    while _footprint(bt_tile, img_tile) > budget:
        if bt_tile > 128:
            bt_tile = _round_up(bt_tile // 2, 128)
        elif img_tile > 1 and img_tile * R_pad > 128:
            img_tile = max(1, img_tile // 2)
        elif bt_tile > 8:
            bt_tile = max(8, _round_up(bt_tile // 2, 8))
        elif img_tile > 1:
            img_tile = max(1, img_tile // 2)
        else:
            break

    Bt_pad = _round_up(Bt, bt_tile)
    n_cap_tiles = Bt_pad // bt_tile
    Bi_pad = _round_up(Bi, img_tile)
    n_img_tiles = Bi_pad // img_tile

    vmem_limit = int(min(budget,
                         max(32 << 20, _footprint(bt_tile, img_tile) + (8 << 20))))

    # ---- padding / precompute ----
    imgs_p = jnp.pad(imgs, ((0, Bi_pad - Bi), (0, R_pad - R), (0, 0)))
    caps_p = jnp.pad(caps, ((0, Bt_pad - Bt), (0, W_pad - W), (0, 0)))
    if mxu_dtype is not None:
        imgs_p = imgs_p.astype(mxu_dtype)
        caps_p = caps_p.astype(mxu_dtype)
    # Padded captions get len=1 (zero rows -> finite values; sliced off below);
    # padded images get len=0 (all regions -> -1; sliced off below).
    cap_lens_p = jnp.pad(cap_lens, (0, Bt_pad - Bt), constant_values=1)
    img_lens_p = jnp.pad(img_lens, (0, Bi_pad - Bi), constant_values=0)

    # Per-caption W x W Gram matrices, once, in f32: lets the kernel compute
    # ||att||^2 = p^T G p without the (Bt, R, D) attended-feature intermediate.
    gram = jnp.einsum('jwd,jvd->jwv', caps_p, caps_p,
                      precision=lax.Precision.HIGHEST,
                      preferred_element_type=jnp.float32)

    kernel = functools.partial(_vsa_kernel, temperature=float(temperature))
    # Grid: captions (outer) x image tiles (inner) -- caption/Gram blocks only
    # change on the outer axis, so they stay resident across all image tiles.
    out = pl.pallas_call(
        kernel,
        out_shape=jax.ShapeDtypeStruct((Bi_pad, R_pad, Bt_pad), jnp.float32),
        grid=(n_cap_tiles, n_img_tiles),
        in_specs=[
            pl.BlockSpec((bt_tile, 1, 1), lambda j, i: (j, 0, 0)),           # cap_lens
            pl.BlockSpec((img_tile, 1, 1), lambda j, i: (i, 0, 0)),          # img_lens
            pl.BlockSpec((img_tile, R_pad, D), lambda j, i: (i, 0, 0)),      # imgs
            pl.BlockSpec((bt_tile, W_pad, D), lambda j, i: (j, 0, 0)),       # caps
            pl.BlockSpec((bt_tile, W_pad, W_pad), lambda j, i: (j, 0, 0)),   # gram
        ],
        out_specs=pl.BlockSpec((img_tile, R_pad, bt_tile),
                               lambda j, i: (i, 0, j)),
        compiler_params=pltpu.CompilerParams(
            dimension_semantics=("parallel", "parallel"),
            vmem_limit_bytes=vmem_limit),
    )(cap_lens_p.reshape(Bt_pad, 1, 1), img_lens_p.reshape(Bi_pad, 1, 1),
      imgs_p, caps_p, gram)

    # (Bi_pad, R_pad, Bt_pad) -> (Bi, Bt, R). TODO(synk): let the downstream
    # consumer take the (img, region, caption) layout to skip this transpose.
    return jnp.transpose(out, (0, 2, 1))[:Bi, :Bt, :R]


def vsa_coding_ref(imgs, caps, img_lens, cap_lens, temperature=0.1):
    """Pure-JAX reference mirroring the torch forward (for validation)."""
    img_lens = jnp.asarray(img_lens, jnp.int32)
    cap_lens = jnp.asarray(cap_lens, jnp.int32)
    max_r = int(jax.device_get(jnp.max(img_lens)))
    max_w = int(jax.device_get(jnp.max(cap_lens)))
    imgs = imgs[:, :max_r, :].astype(jnp.float32)
    caps = caps[:, :max_w, :].astype(jnp.float32)
    Bi, R, D = imgs.shape
    Bt, W, _ = caps.shape
    hi = jax.lax.Precision.HIGHEST
    sims = jnp.einsum('ird,jwd->ijrw', imgs, caps, precision=hi) / temperature
    wmask = jnp.arange(W)[None, :] < cap_lens[:, None]          # (Bt, W)
    sims = jnp.where(wmask[None, :, None, :], sims, -jnp.inf)
    p = jax.nn.softmax(sims, axis=-1)
    p = jnp.where(wmask[None, :, None, :], p, 0.0)
    att = jnp.einsum('ijrw,jwd->ijrd', p, caps, precision=hi)
    num = jnp.sum(att * imgs[:, None, :, :], axis=-1)
    nrm = jnp.linalg.norm(att, axis=-1)
    res = num / (nrm + EPS)
    rmask = jnp.arange(R)[None, :] < img_lens[:, None]          # (Bi, R)
    return jnp.where(rmask[:, None, :], res, -1.0)


if __name__ == "__main__":
    key = jax.random.PRNGKey(0)
    k1, k2, k3, k4, k5, k6 = jax.random.split(key, 6)

    # Case 1: small aligned shapes, single caption & image tile.
    n_img, n_cap, max_regions, max_words, dim = 2, 3, 16, 12, 32
    imgs = jax.random.normal(k1, (n_img, max_regions, dim), dtype=jnp.float32)
    caps = jax.random.normal(k2, (n_cap, max_words, dim), dtype=jnp.float32)
    img_lens = jnp.array([16, 9], dtype=jnp.int32)
    cap_lens = jnp.array([12, 7, 5], dtype=jnp.int32)

    out = jax.block_until_ready(vsa_coding(imgs, caps, img_lens, cap_lens, 0.1))
    ref = vsa_coding_ref(imgs, caps, img_lens, cap_lens, 0.1)
    np.testing.assert_allclose(np.asarray(out), np.asarray(ref),
                               rtol=5e-3, atol=5e-3)

    # Case 2: ragged, unaligned shapes; multiple caption tiles (cap_tile=8).
    n_img2, n_cap2, max_r2, max_w2, dim2 = 3, 20, 11, 10, 48
    imgs2 = jax.random.normal(k3, (n_img2, max_r2, dim2), dtype=jnp.float32)
    caps2 = jax.random.normal(k4, (n_cap2, max_w2, dim2), dtype=jnp.float32)
    img_lens2 = jnp.array([11, 5, 8], dtype=jnp.int32)
    cap_lens2 = jax.random.randint(jax.random.PRNGKey(7), (n_cap2,), 1,
                                   max_w2 + 1).astype(jnp.int32)

    out2 = jax.block_until_ready(
        vsa_coding(imgs2, caps2, img_lens2, cap_lens2, 0.1, cap_tile=8))
    ref2 = vsa_coding_ref(imgs2, caps2, img_lens2, cap_lens2, 0.1)
    np.testing.assert_allclose(np.asarray(out2), np.asarray(ref2),
                               rtol=5e-3, atol=5e-3)

    # Case 3: multiple image tiles + image-batch padding (img_lane_target=32
    # forces IMG_TILE=2 over 5 images -> 3 image tiles, Bi padded to 6).
    n_img3, n_cap3, max_r3, max_w3, dim3 = 5, 6, 9, 7, 64
    imgs3 = jax.random.normal(k5, (n_img3, max_r3, dim3), dtype=jnp.float32)
    caps3 = jax.random.normal(k6, (n_cap3, max_w3, dim3), dtype=jnp.float32)
    img_lens3 = jnp.array([9, 4, 7, 2, 9], dtype=jnp.int32)
    cap_lens3 = jnp.array([7, 3, 5, 1, 6, 7], dtype=jnp.int32)

    out3 = jax.block_until_ready(
        vsa_coding(imgs3, caps3, img_lens3, cap_lens3, 0.1, img_lane_target=32))
    ref3 = vsa_coding_ref(imgs3, caps3, img_lens3, cap_lens3, 0.1)
    np.testing.assert_allclose(np.asarray(out3), np.asarray(ref3),
                               rtol=5e-3, atol=5e-3)

    print("KERNEL_OK")
</pallas_src>

<mosaic_0001>
module attributes {stable_mosaic.version = 11 : i64} {
  func.func @_vsa_kernel(%arg0: i32, %arg1: i32, %arg2: memref<8x1x1xi32, #tpu.memory_space<vmem>>, %arg3: memref<2x1x1xi32, #tpu.memory_space<vmem>>, %arg4: memref<2x16x32xf32, #tpu.memory_space<vmem>>, %arg5: memref<8x16x32xf32, #tpu.memory_space<vmem>>, %arg6: memref<8x16x16xf32, #tpu.memory_space<vmem>>, %arg7: memref<2x16x8xf32, #tpu.memory_space<vmem>>) attributes {dimension_semantics = [#tpu.dimension_semantics<parallel>, #tpu.dimension_semantics<parallel>], iteration_bounds = array<i64: 1, 1>, scalar_prefetch = 0 : i64, scratch_operands = 0 : i64, tpu.core_type = #tpu.core_type<tc>, window_params = [{transform_indices = @transform_0, window_bounds = array<i64: 8, 1, 1>}, {transform_indices = @transform_1, window_bounds = array<i64: 2, 1, 1>}, {transform_indices = @transform_2, window_bounds = array<i64: 2, 16, 32>}, {transform_indices = @transform_3, window_bounds = array<i64: 8, 16, 32>}, {transform_indices = @transform_4, window_bounds = array<i64: 8, 16, 16>}, {transform_indices = @transform_5, window_bounds = array<i64: 2, 16, 8>}]} {
    %c0 = arith.constant 0 : index
    %c0_0 = arith.constant 0 : index
    %c0_1 = arith.constant 0 : index
    %0 = vector.load %arg4[%c0, %c0_0, %c0_1] : memref<2x16x32xf32, #tpu.memory_space<vmem>>, vector<2x16x32xf32>
    %1 = vector.shape_cast %0 : vector<2x16x32xf32> to vector<32x32xf32>
    %c0_2 = arith.constant 0 : index
    %c0_3 = arith.constant 0 : index
    %c0_4 = arith.constant 0 : index
    %2 = vector.load %arg5[%c0_2, %c0_3, %c0_4] : memref<8x16x32xf32, #tpu.memory_space<vmem>>, vector<8x16x32xf32>
    %cst = arith.constant dense<0.000000e+00> : vector<8x16x32xf32>
    %3 = tpu.matmul %2, %1, %cst {dimension_numbers = #tpu.dot_dimension_numbers<[2], [1], [0, 1], [0], [0, 0, 0, 1, 1, 0], [], []>} : vector<8x16x32xf32>, vector<32x32xf32>, vector<8x16x32xf32> -> vector<8x16x32xf32>
    %cst_5 = arith.constant 1.000000e+01 : f32
    %4 = vector.broadcast %cst_5 : f32 to vector<8x16x32xf32>
    %5 = arith.mulf %3, %4 : vector<8x16x32xf32>
    %6 = tpu.iota {dimensions = array<i32: 1>} : vector<8x16x1xi32>
    %c0_6 = arith.constant 0 : index
    %c0_7 = arith.constant 0 : index
    %c0_8 = arith.constant 0 : index
    %7 = vector.load %arg2[%c0_6, %c0_7, %c0_8] : memref<8x1x1xi32, #tpu.memory_space<vmem>>, vector<8x1x1xi32>
    %8 = vector.broadcast %7 : vector<8x1x1xi32> to vector<8x16x1xi32>
    %9 = arith.cmpi slt, %6, %8 : vector<8x16x1xi32>
    %cst_9 = arith.constant -1.000000e+30 : f32
    %10 = vector.shape_cast %9 : vector<8x16x1xi1> to vector<8x16x1xi1>
    %11 = vector.broadcast %10 : vector<8x16x1xi1> to vector<8x16x32xi1>
    %12 = vector.broadcast %cst_9 : f32 to vector<8x16x32xf32>
    %13 = arith.select %11, %5, %12 : vector<8x16x32xi1>, vector<8x16x32xf32>
    %cst_10 = arith.constant dense<0xFF800000> : vector<8x32xf32>
    %14 = vector.multi_reduction <maximumf>, %13, %cst_10 [1] : vector<8x16x32xf32> to vector<8x32xf32>
    %15 = vector.shape_cast %14 : vector<8x32xf32> to vector<8x1x32xf32>
    %16 = vector.broadcast %15 : vector<8x1x32xf32> to vector<8x16x32xf32>
    %17 = arith.subf %13, %16 : vector<8x16x32xf32>
    %18 = math.exp %17 : vector<8x16x32xf32>
    %cst_11 = arith.constant 0.000000e+00 : f32
    %19 = vector.shape_cast %9 : vector<8x16x1xi1> to vector<8x16x1xi1>
    %20 = vector.broadcast %19 : vector<8x16x1xi1> to vector<8x16x32xi1>
    %21 = vector.broadcast %cst_11 : f32 to vector<8x16x32xf32>
    %22 = arith.select %20, %18, %21 : vector<8x16x32xi1>, vector<8x16x32xf32>
    %cst_12 = arith.constant dense<0.000000e+00> : vector<8x32xf32>
    %23 = vector.multi_reduction <add>, %22, %cst_12 [1] : vector<8x16x32xf32> to vector<8x32xf32>
    %24 = vector.shape_cast %23 : vector<8x32xf32> to vector<8x1x32xf32>
    %25 = tpu.reciprocal %24 {approx = true} : vector<8x1x32xf32> -> vector<8x1x32xf32>
    %26 = vector.broadcast %25 : vector<8x1x32xf32> to vector<8x16x32xf32>
    %27 = arith.mulf %22, %26 : vector<8x16x32xf32>
    %28 = arith.mulf %27, %13 : vector<8x16x32xf32>
    %cst_13 = arith.constant dense<0.000000e+00> : vector<8x32xf32>
    %29 = vector.multi_reduction <add>, %28, %cst_13 [1] : vector<8x16x32xf32> to vector<8x32xf32>
    %cst_14 = arith.constant 1.000000e-01 : f32
    %30 = vector.broadcast %cst_14 : f32 to vector<8x32xf32>
    %31 = arith.mulf %29, %30 : vector<8x32xf32>
    %c0_15 = arith.constant 0 : index
    %c0_16 = arith.constant 0 : index
    %c0_17 = arith.constant 0 : index
    %32 = vector.load %arg6[%c0_15, %c0_16, %c0_17] : memref<8x16x16xf32, #tpu.memory_space<vmem>>, vector<8x16x16xf32>
    %cst_18 = arith.constant dense<0.000000e+00> : vector<8x16x32xf32>
    %33 = tpu.matmul %32, %27, %cst_18 {dimension_numbers = #tpu.dot_dimension_numbers<[2], [1], [1], [2], [0, 0, 0, 1, 1, 2], [0], [0]>} : vector<8x16x16xf32>, vector<8x16x32xf32>, vector<8x16x32xf32> -> vector<8x16x32xf32>
    %34 = arith.mulf %27, %33 : vector<8x16x32xf32>
    %cst_19 = arith.constant dense<0.000000e+00> : vector<8x32xf32>
    %35 = vector.multi_reduction <add>, %34, %cst_19 [1] : vector<8x16x32xf32> to vector<8x32xf32>
    %cst_20 = arith.constant 0.000000e+00 : f32
    %36 = vector.broadcast %cst_20 : f32 to vector<8x32xf32>
    %37 = arith.maximumf %35, %36 : vector<8x32xf32>
    %38 = math.sqrt %37 : vector<8x32xf32>
    %cst_21 = arith.constant 9.99999993E-9 : f32
    %39 = vector.broadcast %cst_21 : f32 to vector<8x32xf32>
    %40 = arith.addf %38, %39 : vector<8x32xf32>
    %41 = arith.divf %31, %40 : vector<8x32xf32>
    %42 = tpu.transpose %41, [1, 0] : vector<8x32xf32> -> vector<32x8xf32>
    %43 = vector.shape_cast %42 : vector<32x8xf32> to vector<2x16x8xf32>
    %44 = tpu.iota {dimensions = array<i32: 1>} : vector<2x16x1xi32>
    %c0_22 = arith.constant 0 : index
    %c0_23 = arith.constant 0 : index
    %c0_24 = arith.constant 0 : index
    %45 = vector.load %arg3[%c0_22, %c0_23, %c0_24] : memref<2x1x1xi32, #tpu.memory_space<vmem>>, vector<2x1x1xi32>
    %46 = vector.broadcast %45 : vector<2x1x1xi32> to vector<2x16x1xi32>
    %47 = arith.cmpi slt, %44, %46 : vector<2x16x1xi32>
    %cst_25 = arith.constant -1.000000e+00 : f32
    %48 = vector.shape_cast %47 : vector<2x16x1xi1> to vector<2x16x1xi1>
    %49 = vector.broadcast %48 : vector<2x16x1xi1> to vector<2x16x8xi1>
    %50 = vector.broadcast %cst_25 : f32 to vector<2x16x8xf32>
    %51 = arith.select %49, %43, %50 : vector<2x16x8xi1>, vector<2x16x8xf32>
    %c0_26 = arith.constant 0 : index
    %c0_27 = arith.constant 0 : index
    %c0_28 = arith.constant 0 : index
    %52 = vector.load %arg7[%c0_26, %c0_27, %c0_28] : memref<2x16x8xf32, #tpu.memory_space<vmem>>, vector<2x16x8xf32>
    tpu.vector_store %arg7[%c0_26, %c0_27, %c0_28], %51 {strides = array<i32>} : memref<2x16x8xf32, #tpu.memory_space<vmem>>, vector<2x16x8xf32>,
    return
  }
  func.func @transform_0(%arg0: i32, %arg1: i32) -> (i32, i32, i32) {
    %c0_i32 = arith.constant 0 : i32
    %c0_i32_0 = arith.constant 0 : i32
    %c0_i32_1 = arith.constant 0 : i32
    return %arg0, %c0_i32, %c0_i32_0 : i32, i32, i32
  }
  func.func @transform_1(%arg0: i32, %arg1: i32) -> (i32, i32, i32) {
    %c0_i32 = arith.constant 0 : i32
    %c0_i32_0 = arith.constant 0 : i32
    %c0_i32_1 = arith.constant 0 : i32
    return %arg1, %c0_i32, %c0_i32_0 : i32, i32, i32
  }
  func.func @transform_2(%arg0: i32, %arg1: i32) -> (i32, i32, i32) {
    %c0_i32 = arith.constant 0 : i32
    %c0_i32_0 = arith.constant 0 : i32
    %c0_i32_1 = arith.constant 0 : i32
    return %arg1, %c0_i32, %c0_i32_0 : i32, i32, i32
  }
  func.func @transform_3(%arg0: i32, %arg1: i32) -> (i32, i32, i32) {
    %c0_i32 = arith.constant 0 : i32
    %c0_i32_0 = arith.constant 0 : i32
    %c0_i32_1 = arith.constant 0 : i32
    return %arg0, %c0_i32, %c0_i32_0 : i32, i32, i32
  }
  func.func @transform_4(%arg0: i32, %arg1: i32) -> (i32, i32, i32) {
    %c0_i32 = arith.constant 0 : i32
    %c0_i32_0 = arith.constant 0 : i32
    %c0_i32_1 = arith.constant 0 : i32
    return %arg0, %c0_i32, %c0_i32_0 : i32, i32, i32
  }
  func.func @transform_5(%arg0: i32, %arg1: i32) -> (i32, i32, i32) {
    %c0_i32 = arith.constant 0 : i32
    %c0_i32_0 = arith.constant 0 : i32
    return %arg1, %c0_i32, %arg0 : i32, i32, i32
  }
}

</mosaic_0001>

<llo_original>
// kernel: tpu_custom_call.1
$region0: #{tpu_custom_call.1}
  #allocation0 [shape = 'u32[]', space=smem, size = 0x4, offset = 0x4, fixed_abs, tag = 'smem constant byte address 0x4 - core index']
  #allocation1 [shape = 'u32[144,128]{1,0:T(1,128)}', space=vmem, size = 0x12000, scoped, tag = 'internal scratch']
  %s0 = inlined_call_operand.vmem [shape: s32[8,1,1], index: 0, kind: input, shape index: {}]
  %s1 = inlined_call_operand.vmem [shape: s32[2,1,1], index: 1, kind: input, shape index: {}]
  %s2 = inlined_call_operand.hbm [shape: f32[2,16,32], index: 2, kind: input, shape index: {}]
  %s3 = inlined_call_operand.hbm [shape: f32[8,16,32], index: 3, kind: input, shape index: {}]
  %s4 = inlined_call_operand.hbm [shape: f32[8,16,16], index: 4, kind: input, shape index: {}]
  %s5 = inlined_call_operand.vmem [shape: f32[2,16,8], index: 5, kind: output, shape index: {}]
  %s6 = sld [smem:[#allocation0]]
  $region42: #{tpu_custom_call.1} parent=0
    _
  %s8 = ssub.s32 1, %s6
  %s9 = scalar_select 0, %s8, %s6
  $region1: #{tpu_custom_call.1} parent=0
    #allocation2 [shape = 'u8[16384]{0}', space=vmem, size = 0x4000, scoped, tag = 'input window, operand 2, single buffered']
    #allocation3 [shape = 's32[1]{0}', space=sflag, size = 0x4, scoped, tag = 'scoped memory for tpu_custom_call.1']
    #allocation4 [shape = 'u8[65536]{0}', space=vmem, size = 0x10000, scoped, tag = 'input window, operand 3, single buffered']
    #allocation5 [shape = 's32[1]{0}', space=sflag, size = 0x4, scoped, tag = 'scoped memory for tpu_custom_call.1']
    #allocation6 [shape = 'u8[65536]{0}', space=vmem, size = 0x10000, scoped, tag = 'input window, operand 4, single buffered']
    %10 = vsyncpa [#allocation3], 0
    %11 = vsyncpa [#allocation5], 0
    // Predicated region
    $region2: #{tpu_custom_call.1} parent=1 // pred_check
      _
    $region3: #{tpu_custom_call.1} parent=1 // pred_check_branch
      %13 = sbr.rel (0) target = $region5
    $region4: #{tpu_custom_call.1} parent=1 // pred_region
      _
    $region5: #{tpu_custom_call.1} parent=1 // pred_fallthru
      _
    // Predicated region
    $region6: #{tpu_custom_call.1} parent=1 // pred_check
      _
    $region7: #{tpu_custom_call.1} parent=1 // pred_check_branch
      %15 = sbr.rel (0) target = $region9
    $region8: #{tpu_custom_call.1} parent=1 // pred_region
      _
    $region9: #{tpu_custom_call.1} parent=1 // pred_fallthru
      _
    // Predicated region
    $region10: #{tpu_custom_call.1} parent=1 // pred_check
      _
    $region11: #{tpu_custom_call.1} parent=1 // pred_check_branch
      %17 = sbr.rel (0) target = $region13
    $region12: #{tpu_custom_call.1} parent=1 // pred_region
      %s19 = ssub.s32 512, 512
      %20 = vsyncadd [#allocation3], %s19
      %s21 = sshll.u32 [#allocation2], 4
      %s22 = int_to_ptr.vmem [resolvable:$true] %s21
      %27 = dma.hbm_to_vmem [thread:$0]  %s2, 512, %s22, [#allocation3], 128, 128, 8
    $region13: #{tpu_custom_call.1} parent=1 // pred_fallthru
      _
    // Predicated region
    $region14: #{tpu_custom_call.1} parent=1 // pred_check
      _
    $region15: #{tpu_custom_call.1} parent=1 // pred_check_branch
      %29 = sbr.rel (0) target = $region17
    $region16: #{tpu_custom_call.1} parent=1 // pred_region
      %s31 = ssub.s32 2048, 2048
      %32 = vsyncadd [#allocation5], %s31
      %s33 = sshll.u32 [#allocation4], 4
      %s34 = int_to_ptr.vmem [resolvable:$true] %s33
      %39 = dma.hbm_to_vmem [thread:$0]  %s3, 2048, %s34, [#allocation5], 128, 128, 8
    $region17: #{tpu_custom_call.1} parent=1 // pred_fallthru
      _
    // Predicated region
    $region18: #{tpu_custom_call.1} parent=1 // pred_check
      _
    $region19: #{tpu_custom_call.1} parent=1 // pred_check_branch
      %41 = sbr.rel (0) target = $region21
    $region20: #{tpu_custom_call.1} parent=1 // pred_region
      %s43 = ssub.s32 2048, 2048
      %44 = vsyncadd [#allocation5], %s43
      %s45 = sshll.u32 [#allocation6], 4
      %s46 = int_to_ptr.vmem [resolvable:$true] %s45
      %51 = dma.hbm_to_vmem [thread:$0]  %s4, 2048, %s46, [#allocation5], 128, 128, 8
    $region21: #{tpu_custom_call.1} parent=1 // pred_fallthru
      _
    // Predicated region
    $region22: #{tpu_custom_call.1} parent=1 // pred_check
      _
    $region23: #{tpu_custom_call.1} parent=1 // pred_check_branch
      %53 = sbr.rel (0) target = $region25
    $region24: #{tpu_custom_call.1} parent=1 // pred_region
      %54 = dma.done [#allocation3], 512
    $region25: #{tpu_custom_call.1} parent=1 // pred_fallthru
      _
    // Predicated region
    $region26: #{tpu_custom_call.1} parent=1 // pred_check
      _
    $region27: #{tpu_custom_call.1} parent=1 // pred_check_branch
      %56 = sbr.rel (0) target = $region29
    $region28: #{tpu_custom_call.1} parent=1 // pred_region
      %57 = dma.done [#allocation5], 2048
    $region29: #{tpu_custom_call.1} parent=1 // pred_fallthru
      _
    // Predicated region
    $region30: #{tpu_custom_call.1} parent=1 // pred_check
      _
    $region31: #{tpu_custom_call.1} parent=1 // pred_check_branch
      %59 = sbr.rel (0) target = $region33
    $region32: #{tpu_custom_call.1} parent=1 // pred_region
      %60 = dma.done [#allocation5], 2048
    $region33: #{tpu_custom_call.1} parent=1 // pred_fallthru
      _
    %v61 = vld [vmem:[#allocation2] sm:$0xff]
    %v62 = vld [vmem:[#allocation2 + $0x8] sm:$0xff]
    %v63 = vld [vmem:[#allocation2 + $0x10] sm:$0xff]
    %v64 = vld [vmem:[#allocation2 + $0x18] sm:$0xff]
    %v65 = vld [vmem:[#allocation4] sm:$0xff]
    %v66 = vld [vmem:[#allocation4 + $0x8] sm:$0xff]
    %v67 = vld [vmem:[#allocation4 + $0x10] sm:$0xff]
    %v68 = vld [vmem:[#allocation4 + $0x18] sm:$0xff]
    %v69 = vld [vmem:[#allocation4 + $0x20] sm:$0xff]
    %v70 = vld [vmem:[#allocation4 + $0x28] sm:$0xff]
    %v71 = vld [vmem:[#allocation4 + $0x30] sm:$0xff]
    %v72 = vld [vmem:[#allocation4 + $0x38] sm:$0xff]
    %v73 = vld [vmem:[#allocation4 + $0x40] sm:$0xff]
    %v74 = vld [vmem:[#allocation4 + $0x48] sm:$0xff]
    %v75 = vld [vmem:[#allocation4 + $0x50] sm:$0xff]
    %v76 = vld [vmem:[#allocation4 + $0x58] sm:$0xff]
    %v77 = vld [vmem:[#allocation4 + $0x60] sm:$0xff]
    %v78 = vld [vmem:[#allocation4 + $0x68] sm:$0xff]
    %v79 = vld [vmem:[#allocation4 + $0x70] sm:$0xff]
    %v80 = vld [vmem:[#allocation4 + $0x78] sm:$0xff]
    %vm81 = vcmask 261120
    %v83 = vsel %vm81, %v65, 0
    %v86 = vsel %vm81, %v66, 0
    %v89 = vsel %vm81, %v67, 0
    %v92 = vsel %vm81, %v68, 0
    %v95 = vsel %vm81, %v69, 0
    %v98 = vsel %vm81, %v70, 0
    %v101 = vsel %vm81, %v71, 0
    %v104 = vsel %vm81, %v72, 0
    %v107 = vsel %vm81, %v73, 0
    %v110 = vsel %vm81, %v74, 0
    %v113 = vsel %vm81, %v75, 0
    %v116 = vsel %vm81, %v76, 0
    %v119 = vsel %vm81, %v77, 0
    %v122 = vsel %vm81, %v78, 0
    %v125 = vsel %vm81, %v79, 0
    %v128 = vsel %vm81, %v80, 0
    %v131 = vsel %vm81, %v61, 0
    %v134 = vsel %vm81, %v62, 0
    %v137 = vsel %vm81, %v63, 0
    %v140 = vsel %vm81, %v64, 0
    %142 = vmatprep.subr.mxu0 0.0
    %143 = vmatpush1.xpose.msra.mxu0 %v131
    %144 = vmatprep.subr.mxu0 0.0
    %145 = vmatpush1.xpose.msra.mxu0 %v134
    %146 = vmatprep.subr.mxu0 0.0
    %147 = vmatpush1.xpose.msra.mxu0 %v137
    %148 = vmatprep.subr.mxu0 0.0
    %149 = vmatpush1.xpose.msra.mxu0 %v140
    %150 = vmatprep.subr.mxu0 0.0
    %151 = vmatpush1.xpose.msra.mxu0 0.0
    %152 = vmatprep.subr.mxu0 0.0
    %153 = vmatpush1.xpose.msra.mxu0 0.0
    %154 = vmatprep.subr.mxu0 0.0
    %155 = vmatpush1.xpose.msra.mxu0 0.0
    %156 = vmatprep.subr.mxu0 0.0
    %157 = vmatpush1.xpose.msra.mxu0 0.0
    %158 = vmatprep.subr.mxu0 0.0
    %159 = vmatpush1.xpose.msra.mxu0 0.0
    %160 = vmatprep.subr.mxu0 0.0
    %161 = vmatpush1.xpose.msra.mxu0 0.0
    %162 = vmatprep.subr.mxu0 0.0
    %163 = vmatpush1.xpose.msra.mxu0 0.0
    %164 = vmatprep.subr.mxu0 0.0
    %165 = vmatpush1.xpose.msra.mxu0 0.0
    %166 = vmatprep.subr.mxu0 0.0
    %167 = vmatpush1.xpose.msra.mxu0 0.0
    %168 = vmatprep.subr.mxu0 0.0
    %169 = vmatpush1.xpose.msra.mxu0 0.0
    %170 = vmatprep.subr.mxu0 0.0
    %171 = vmatpush1.xpose.msra.mxu0 0.0
    %172 = vmatprep.subr.mxu0 0.0
    %173 = vmatpush1.xpose.msra.mxu0 0.0
    %174 = vmatprep.subr.mxu0 0.0
    %175 = vmatpush1.xpose.msra.mxu0 0.0
    %176 = vmatprep.subr.mxu0 0.0
    %177 = vmatpush1.xpose.msra.mxu0 0.0
    %178 = vmatprep.subr.mxu0 0.0
    %179 = vmatpush1.xpose.msra.mxu0 0.0
    %180 = vmatprep.subr.mxu0 0.0
    %181 = vmatpush1.xpose.msra.mxu0 0.0
    %182 = vmatprep.subr.mxu0 0.0
    %183 = vmatpush1.xpose.msra.mxu0 0.0
    %184 = vmatprep.subr.mxu0 0.0
    %185 = vmatpush1.xpose.msra.mxu0 0.0
    %186 = vmatprep.subr.mxu0 0.0
    %187 = vmatpush1.xpose.msra.mxu0 0.0
    %188 = vmatprep.subr.mxu0 0.0
    %189 = vmatpush1.xpose.msra.mxu0 0.0
    %190 = vmatprep.subr.mxu0 0.0
    %191 = vmatpush1.xpose.msra.mxu0 0.0
    %192 = vmatprep.subr.mxu0 0.0
    %193 = vmatpush1.xpose.msra.mxu0 0.0
    %194 = vmatprep.subr.mxu0 0.0
    %195 = vmatpush1.xpose.msra.mxu0 0.0
    %196 = vmatprep.subr.mxu0 0.0
    %197 = vmatpush1.xpose.msra.mxu0 0.0
    %198 = vmatprep.subr.mxu0 0.0
    %199 = vmatpush1.xpose.msra.mxu0 0.0
    %200 = vmatprep.subr.mxu0 0.0
    %201 = vmatpush1.xpose.msra.mxu0 0.0
    %202 = vmatprep.subr.mxu0 0.0
    %203 = vmatpush1.xpose.msra.mxu0 0.0
    %204 = vmatprep.subr.mxu0 0.0
    %205 = vmatpush1.xpose.msra.mxu0 0.0
    %206 = vmatprep.mubr.f32.mxu0 0.0
    %207 = vmatmul.mubr.f32.gmra.mrb[0].mxu0 %v83
    %v208 = vpop.f32.mrb[0].mxu0
    %v209 = vadd.f32 0.0, %v208
    %v210 = vpop.f32.mrb[0].mxu0
    %211 = vmatprep.mubr.f32.mxu0 0.0
    %212 = vmatmul.mubr.f32.gmra.mrb[0].mxu0 %v86
    %v213 = vpop.f32.mrb[0].mxu0
    %v214 = vadd.f32 0.0, %v213
    %v215 = vpop.f32.mrb[0].mxu0
    %216 = vmatprep.mubr.f32.mxu0 0.0
    %217 = vmatmul.mubr.f32.gmra.mrb[0].mxu0 %v89
    %v218 = vpop.f32.mrb[0].mxu0
    %v219 = vadd.f32 0.0, %v218
    %v220 = vpop.f32.mrb[0].mxu0
    %221 = vmatprep.mubr.f32.mxu0 0.0
    %222 = vmatmul.mubr.f32.gmra.mrb[0].mxu0 %v92
    %v223 = vpop.f32.mrb[0].mxu0
    %v224 = vadd.f32 0.0, %v223
    %v225 = vpop.f32.mrb[0].mxu0
    %226 = vmatprep.mubr.f32.mxu0 0.0
    %227 = vmatmul.mubr.f32.gmra.mrb[0].mxu0 %v95
    %v228 = vpop.f32.mrb[0].mxu0
    %v229 = vadd.f32 0.0, %v228
    %v230 = vpop.f32.mrb[0].mxu0
    %231 = vmatprep.mubr.f32.mxu0 0.0
    %232 = vmatmul.mubr.f32.gmra.mrb[0].mxu0 %v98
    %v233 = vpop.f32.mrb[0].mxu0
    %v234 = vadd.f32 0.0, %v233
    %v235 = vpop.f32.mrb[0].mxu0
    %236 = vmatprep.mubr.f32.mxu0 0.0
    %237 = vmatmul.mubr.f32.gmra.mrb[0].mxu0 %v101
    %v238 = vpop.f32.mrb[0].mxu0
    %v239 = vadd.f32 0.0, %v238
    %v240 = vpop.f32.mrb[0].mxu0
    %241 = vmatprep.mubr.f32.mxu0 0.0
    %242 = vmatmul.mubr.f32.gmra.mrb[0].mxu0 %v104
    %v243 = vpop.f32.mrb[0].mxu0
    %v244 = vadd.f32 0.0, %v243
    %v245 = vpop.f32.mrb[0].mxu0
    %246 = vmatprep.mubr.f32.mxu0 0.0
    %247 = vmatmul.mubr.f32.gmra.mrb[0].mxu0 %v107
    %v248 = vpop.f32.mrb[0].mxu0
    %v249 = vadd.f32 0.0, %v248
    %v250 = vpop.f32.mrb[0].mxu0
    %251 = vmatprep.mubr.f32.mxu0 0.0
    %252 = vmatmul.mubr.f32.gmra.mrb[0].mxu0 %v110
    %v253 = vpop.f32.mrb[0].mxu0
    %v254 = vadd.f32 0.0, %v253
    %v255 = vpop.f32.mrb[0].mxu0
    %256 = vmatprep.mubr.f32.mxu0 0.0
    %257 = vmatmul.mubr.f32.gmra.mrb[0].mxu0 %v113
    %v258 = vpop.f32.mrb[0].mxu0
    %v259 = vadd.f32 0.0, %v258
    %v260 = vpop.f32.mrb[0].mxu0
    %261 = vmatprep.mubr.f32.mxu0 0.0
    %262 = vmatmul.mubr.f32.gmra.mrb[0].mxu0 %v116
    %v263 = vpop.f32.mrb[0].mxu0
    %v264 = vadd.f32 0.0, %v263
    %v265 = vpop.f32.mrb[0].mxu0
    %266 = vmatprep.mubr.f32.mxu0 0.0
    %267 = vmatmul.mubr.f32.gmra.mrb[0].mxu0 %v119
    %v268 = vpop.f32.mrb[0].mxu0
    %v269 = vadd.f32 0.0, %v268
    %v270 = vpop.f32.mrb[0].mxu0
    %271 = vmatprep.mubr.f32.mxu0 0.0
    %272 = vmatmul.mubr.f32.gmra.mrb[0].mxu0 %v122
    %v273 = vpop.f32.mrb[0].mxu0
    %v274 = vadd.f32 0.0, %v273
    %v275 = vpop.f32.mrb[0].mxu0
    %276 = vmatprep.mubr.f32.mxu0 0.0
    %277 = vmatmul.mubr.f32.gmra.mrb[0].mxu0 %v125
    %v278 = vpop.f32.mrb[0].mxu0
    %v279 = vadd.f32 0.0, %v278
    %v280 = vpop.f32.mrb[0].mxu0
    %281 = vmatprep.mubr.f32.mxu0 0.0
    %282 = vmatmul.mubr.f32.gmra.mrb[0].mxu0 %v128
    %v283 = vpop.f32.mrb[0].mxu0
    %v284 = vadd.f32 0.0, %v283
    %v285 = vpop.f32.mrb[0].mxu0
    %286 = vdwg.mxu0
    %v287 = vmul.f32 %v209, 10.0
    %v288 = vmul.f32 %v214, 10.0
    %v289 = vmul.f32 %v219, 10.0
    %v290 = vmul.f32 %v224, 10.0
    %v291 = vmul.f32 %v229, 10.0
    %v292 = vmul.f32 %v234, 10.0
    %v293 = vmul.f32 %v239, 10.0
    %v294 = vmul.f32 %v244, 10.0
    %v295 = vmul.f32 %v249, 10.0
    %v296 = vmul.f32 %v254, 10.0
    %v297 = vmul.f32 %v259, 10.0
    %v298 = vmul.f32 %v264, 10.0
    %v299 = vmul.f32 %v269, 10.0
    %v300 = vmul.f32 %v274, 10.0
    %v301 = vmul.f32 %v279, 10.0
    %v302 = vmul.f32 %v284, 10.0
    %v303 = vlaneseq
    %v304 = vshrl.u32 %v303, 7
    %v305 = vadd.s32 %v304, 8
    %v306 = vld [vmem:[%s0] sm:$0x1]
    %v307 = vld [vmem:[%s0 + $0x1] sm:$0x1]
    %v308 = vld [vmem:[%s0 + $0x2] sm:$0x1]
    %v309 = vld [vmem:[%s0 + $0x3] sm:$0x1]
    %v310 = vld [vmem:[%s0 + $0x4] sm:$0x1]
    %v311 = vld [vmem:[%s0 + $0x5] sm:$0x1]
    %v312 = vld [vmem:[%s0 + $0x6] sm:$0x1]
    %v313 = vld [vmem:[%s0 + $0x7] sm:$0x1]
    %v314 = vlaneseq
    %v315 = vshrl.u32 %v314, 7
    %v316 = vsub.s32 0, %v315
    %v317 = vrot.slane %v306, %v316
    %v318 = vlaneseq
    %v319 = vshrl.u32 %v318, 7
    %v320 = vsub.s32 0, %v319
    %v321 = vrot.slane %v307, %v320
    %v322 = vlaneseq
    %v323 = vshrl.u32 %v322, 7
    %v324 = vsub.s32 0, %v323
    %v325 = vrot.slane %v308, %v324
    %v326 = vlaneseq
    %v327 = vshrl.u32 %v326, 7
    %v328 = vsub.s32 0, %v327
    %v329 = vrot.slane %v309, %v328
    %v330 = vlaneseq
    %v331 = vshrl.u32 %v330, 7
    %v332 = vsub.s32 0, %v331
    %v333 = vrot.slane %v310, %v332
    %v334 = vlaneseq
    %v335 = vshrl.u32 %v334, 7
    %v336 = vsub.s32 0, %v335
    %v337 = vrot.slane %v311, %v336
    %v338 = vlaneseq
    %v339 = vshrl.u32 %v338, 7
    %v340 = vsub.s32 0, %v339
    %v341 = vrot.slane %v312, %v340
    %v342 = vlaneseq
    %v343 = vshrl.u32 %v342, 7
    %v344 = vsub.s32 0, %v343
    %v345 = vrot.slane %v313, %v344
    %vm346 = vcmp.lt.s32.totalorder %v304, %v317
    %vm347 = vcmp.lt.s32.totalorder %v305, %v317
    %vm348 = vcmp.lt.s32.totalorder %v304, %v321
    %vm349 = vcmp.lt.s32.totalorder %v305, %v321
    %vm350 = vcmp.lt.s32.totalorder %v304, %v325
    %vm351 = vcmp.lt.s32.totalorder %v305, %v325
    %vm352 = vcmp.lt.s32.totalorder %v304, %v329
    %vm353 = vcmp.lt.s32.totalorder %v305, %v329
    %vm354 = vcmp.lt.s32.totalorder %v304, %v333
    %vm355 = vcmp.lt.s32.totalorder %v305, %v333
    %vm356 = vcmp.lt.s32.totalorder %v304, %v337
    %vm357 = vcmp.lt.s32.totalorder %v305, %v337
    %vm358 = vcmp.lt.s32.totalorder %v304, %v341
    %vm359 = vcmp.lt.s32.totalorder %v305, %v341
    %vm360 = vcmp.lt.s32.totalorder %v304, %v345
    %vm361 = vcmp.lt.s32.totalorder %v305, %v345
    %v362 = vsel %vm346, 1, 0
    %v363 = vsel %vm347, 1, 0
    %v364 = vsel %vm348, 1, 0
    %v365 = vsel %vm349, 1, 0
    %v366 = vsel %vm350, 1, 0
    %v367 = vsel %vm351, 1, 0
    %v368 = vsel %vm352, 1, 0
    %v369 = vsel %vm353, 1, 0
    %v370 = vsel %vm354, 1, 0
    %v371 = vsel %vm355, 1, 0
    %v372 = vsel %vm356, 1, 0
    %v373 = vsel %vm357, 1, 0
    %v374 = vsel %vm358, 1, 0
    %v375 = vsel %vm359, 1, 0
    %v376 = vsel %vm360, 1, 0
    %v377 = vsel %vm361, 1, 0
    %378 = vset.pattern.permute.xlu0 0
    %379 = vperm.xlu0 %378, %v362
    %v380 = vpop.permute.xlu0 %379
    %381 = vset.pattern.permute.xlu0 0
    %382 = vperm.xlu0 %381, %v363
    %v383 = vpop.permute.xlu0 %382
    %384 = vset.pattern.permute.xlu0 0
    %385 = vperm.xlu0 %384, %v364
    %v386 = vpop.permute.xlu0 %385
    %387 = vset.pattern.permute.xlu0 0
    %388 = vperm.xlu0 %387, %v365
    %v389 = vpop.permute.xlu0 %388
    %390 = vset.pattern.permute.xlu0 0
    %391 = vperm.xlu0 %390, %v366
    %v392 = vpop.permute.xlu0 %391
    %393 = vset.pattern.permute.xlu0 0
    %394 = vperm.xlu0 %393, %v367
    %v395 = vpop.permute.xlu0 %394
    %396 = vset.pattern.permute.xlu0 0
    %397 = vperm.xlu0 %396, %v368
    %v398 = vpop.permute.xlu0 %397
    %399 = vset.pattern.permute.xlu0 0
    %400 = vperm.xlu0 %399, %v369
    %v401 = vpop.permute.xlu0 %400
    %402 = vset.pattern.permute.xlu0 0
    %403 = vperm.xlu0 %402, %v370
    %v404 = vpop.permute.xlu0 %403
    %405 = vset.pattern.permute.xlu0 0
    %406 = vperm.xlu0 %405, %v371
    %v407 = vpop.permute.xlu0 %406
    %408 = vset.pattern.permute.xlu0 0
    %409 = vperm.xlu0 %408, %v372
    %v410 = vpop.permute.xlu0 %409
    %411 = vset.pattern.permute.xlu0 0
    %412 = vperm.xlu0 %411, %v373
    %v413 = vpop.permute.xlu0 %412
    %414 = vset.pattern.permute.xlu0 0
    %415 = vperm.xlu0 %414, %v374
    %v416 = vpop.permute.xlu0 %415
    %417 = vset.pattern.permute.xlu0 0
    %418 = vperm.xlu0 %417, %v375
    %v419 = vpop.permute.xlu0 %418
    %420 = vset.pattern.permute.xlu0 0
    %421 = vperm.xlu0 %420, %v376
    %v422 = vpop.permute.xlu0 %421
    %423 = vset.pattern.permute.xlu0 0
    %424 = vperm.xlu0 %423, %v377
    %v425 = vpop.permute.xlu0 %424
    %vm426 = vcmp.eq.s32.totalorder %v380, 1
    %vm427 = vcmp.eq.s32.totalorder %v383, 1
    %vm428 = vcmp.eq.s32.totalorder %v386, 1
    %vm429 = vcmp.eq.s32.totalorder %v389, 1
    %vm430 = vcmp.eq.s32.totalorder %v392, 1
    %vm431 = vcmp.eq.s32.totalorder %v395, 1
    %vm432 = vcmp.eq.s32.totalorder %v398, 1
    %vm433 = vcmp.eq.s32.totalorder %v401, 1
    %vm434 = vcmp.eq.s32.totalorder %v404, 1
    %vm435 = vcmp.eq.s32.totalorder %v407, 1
    %vm436 = vcmp.eq.s32.totalorder %v410, 1
    %vm437 = vcmp.eq.s32.totalorder %v413, 1
    %vm438 = vcmp.eq.s32.totalorder %v416, 1
    %vm439 = vcmp.eq.s32.totalorder %v419, 1
    %vm440 = vcmp.eq.s32.totalorder %v422, 1
    %vm441 = vcmp.eq.s32.totalorder %v425, 1
    %v442 = vsel %vm426, %v287, -1e+30
    %v443 = vsel %vm427, %v288, -1e+30
    %v444 = vsel %vm428, %v289, -1e+30
    %v445 = vsel %vm429, %v290, -1e+30
    %v446 = vsel %vm430, %v291, -1e+30
    %v447 = vsel %vm431, %v292, -1e+30
    %v448 = vsel %vm432, %v293, -1e+30
    %v449 = vsel %vm433, %v294, -1e+30
    %v450 = vsel %vm434, %v295, -1e+30
    %v451 = vsel %vm435, %v296, -1e+30
    %v452 = vsel %vm436, %v297, -1e+30
    %v453 = vsel %vm437, %v298, -1e+30
    %v454 = vsel %vm438, %v299, -1e+30
    %v455 = vsel %vm439, %v300, -1e+30
    %v456 = vsel %vm440, %v301, -1e+30
    %v457 = vsel %vm441, %v302, -1e+30
    %v458 = vsel %vm81, %v442, -inf
    %v459 = vsel %vm81, %v443, -inf
    %v460 = vmax.f32 %v458, %v459
    %v461 = vrot.slane %v460, 4
    %v462 = vmax.f32 %v460, %v461
    %v463 = vrot.slane %v462, 2
    %v464 = vmax.f32 %v462, %v463
    %v465 = vrot.slane %v464, 1
    %v466 = vmax.f32 %v464, %v465
    %v467 = vsel %vm81, %v444, -inf
    %v468 = vsel %vm81, %v445, -inf
    %v469 = vmax.f32 %v467, %v468
    %v470 = vrot.slane %v469, 4
    %v471 = vmax.f32 %v469, %v470
    %v472 = vrot.slane %v471, 2
    %v473 = vmax.f32 %v471, %v472
    %v474 = vrot.slane %v473, 1
    %v475 = vmax.f32 %v473, %v474
    %v476 = vsel %vm81, %v446, -inf
    %v477 = vsel %vm81, %v447, -inf
    %v478 = vmax.f32 %v476, %v477
    %v479 = vrot.slane %v478, 4
    %v480 = vmax.f32 %v478, %v479
    %v481 = vrot.slane %v480, 2
    %v482 = vmax.f32 %v480, %v481
    %v483 = vrot.slane %v482, 1
    %v484 = vmax.f32 %v482, %v483
    %v485 = vsel %vm81, %v448, -inf
    %v486 = vsel %vm81, %v449, -inf
    %v487 = vmax.f32 %v485, %v486
    %v488 = vrot.slane %v487, 4
    %v489 = vmax.f32 %v487, %v488
    %v490 = vrot.slane %v489, 2
    %v491 = vmax.f32 %v489, %v490
    %v492 = vrot.slane %v491, 1
    %v493 = vmax.f32 %v491, %v492
    %v494 = vsel %vm81, %v450, -inf
    %v495 = vsel %vm81, %v451, -inf
    %v496 = vmax.f32 %v494, %v495
    %v497 = vrot.slane %v496, 4
    %v498 = vmax.f32 %v496, %v497
    %v499 = vrot.slane %v498, 2
    %v500 = vmax.f32 %v498, %v499
    %v501 = vrot.slane %v500, 1
    %v502 = vmax.f32 %v500, %v501
    %v503 = vsel %vm81, %v452, -inf
    %v504 = vsel %vm81, %v453, -inf
    %v505 = vmax.f32 %v503, %v504
    %v506 = vrot.slane %v505, 4
    %v507 = vmax.f32 %v505, %v506
    %v508 = vrot.slane %v507, 2
    %v509 = vmax.f32 %v507, %v508
    %v510 = vrot.slane %v509, 1
    %v511 = vmax.f32 %v509, %v510
    %v512 = vsel %vm81, %v454, -inf
    %v513 = vsel %vm81, %v455, -inf
    %v514 = vmax.f32 %v512, %v513
    %v515 = vrot.slane %v514, 4
    %v516 = vmax.f32 %v514, %v515
    %v517 = vrot.slane %v516, 2
    %v518 = vmax.f32 %v516, %v517
    %v519 = vrot.slane %v518, 1
    %v520 = vmax.f32 %v518, %v519
    %v521 = vsel %vm81, %v456, -inf
    %v522 = vsel %vm81, %v457, -inf
    %v523 = vmax.f32 %v521, %v522
    %v524 = vrot.slane %v523, 4
    %v525 = vmax.f32 %v523, %v524
    %v526 = vrot.slane %v525, 2
    %v527 = vmax.f32 %v525, %v526
    %v528 = vrot.slane %v527, 1
    %v529 = vmax.f32 %v527, %v528
    %v530 = vsub.f32 %v442, %v466
    %v531 = vsub.f32 %v443, %v466
    %v532 = vsub.f32 %v444, %v475
    %v533 = vsub.f32 %v445, %v475
    %v534 = vsub.f32 %v446, %v484
    %v535 = vsub.f32 %v447, %v484
    %v536 = vsub.f32 %v448, %v493
    %v537 = vsub.f32 %v449, %v493
    %v538 = vsub.f32 %v450, %v502
    %v539 = vsub.f32 %v451, %v502
    %v540 = vsub.f32 %v452, %v511
    %v541 = vsub.f32 %v453, %v511
    %v542 = vsub.f32 %v454, %v520
    %v543 = vsub.f32 %v455, %v520
    %v544 = vsub.f32 %v456, %v529
    %v545 = vsub.f32 %v457, %v529
    %v546 = vmul.f32 %v530, 1.442695
    %v547 = vpow.pop %v546
    %v548 = vmul.f32 %v531, 1.442695
    %v549 = vpow.pop %v548
    %v550 = vmul.f32 %v532, 1.442695
    %v551 = vpow.pop %v550
    %v552 = vmul.f32 %v533, 1.442695
    %v553 = vpow.pop %v552
    %v554 = vmul.f32 %v534, 1.442695
    %v555 = vpow.pop %v554
    %v556 = vmul.f32 %v535, 1.442695
    %v557 = vpow.pop %v556
    %v558 = vmul.f32 %v536, 1.442695
    %v559 = vpow.pop %v558
    %v560 = vmul.f32 %v537, 1.442695
    %v561 = vpow.pop %v560
    %v562 = vmul.f32 %v538, 1.442695
    %v563 = vpow.pop %v562
    %v564 = vmul.f32 %v539, 1.442695
    %v565 = vpow.pop %v564
    %v566 = vmul.f32 %v540, 1.442695
    %v567 = vpow.pop %v566
    %v568 = vmul.f32 %v541, 1.442695
    %v569 = vpow.pop %v568
    %v570 = vmul.f32 %v542, 1.442695
    %v571 = vpow.pop %v570
    %v572 = vmul.f32 %v543, 1.442695
    %v573 = vpow.pop %v572
    %v574 = vmul.f32 %v544, 1.442695
    %v575 = vpow.pop %v574
    %v576 = vmul.f32 %v545, 1.442695
    %v577 = vpow.pop %v576
    %v578 = vsel %vm426, %v547, 0.0
    %v579 = vsel %vm427, %v549, 0.0
    %v580 = vsel %vm428, %v551, 0.0
    %v581 = vsel %vm429, %v553, 0.0
    %v582 = vsel %vm430, %v555, 0.0
    %v583 = vsel %vm431, %v557, 0.0
    %v584 = vsel %vm432, %v559, 0.0
    %v585 = vsel %vm433, %v561, 0.0
    %v586 = vsel %vm434, %v563, 0.0
    %v587 = vsel %vm435, %v565, 0.0
    %v588 = vsel %vm436, %v567, 0.0
    %v589 = vsel %vm437, %v569, 0.0
    %v590 = vsel %vm438, %v571, 0.0
    %v591 = vsel %vm439, %v573, 0.0
    %v592 = vsel %vm440, %v575, 0.0
    %v593 = vsel %vm441, %v577, 0.0
    %v594 = vsel %vm81, %v578, 0.0
    %v595 = vsel %vm81, %v579, 0.0
    %v596 = vadd.f32 %v594, %v595
    %v597 = vrot.slane %v596, 4
    %v598 = vadd.f32 %v596, %v597
    %v599 = vrot.slane %v598, 2
    %v600 = vadd.f32 %v598, %v599
    %v601 = vrot.slane %v600, 1
    %v602 = vadd.f32 %v600, %v601
    %v603 = vsel %vm81, %v580, 0.0
    %v604 = vsel %vm81, %v581, 0.0
    %v605 = vadd.f32 %v603, %v604
    %v606 = vrot.slane %v605, 4
    %v607 = vadd.f32 %v605, %v606
    %v608 = vrot.slane %v607, 2
    %v609 = vadd.f32 %v607, %v608
    %v610 = vrot.slane %v609, 1
    %v611 = vadd.f32 %v609, %v610
    %v612 = vsel %vm81, %v582, 0.0
    %v613 = vsel %vm81, %v583, 0.0
    %v614 = vadd.f32 %v612, %v613
    %v615 = vrot.slane %v614, 4
    %v616 = vadd.f32 %v614, %v615
    %v617 = vrot.slane %v616, 2
    %v618 = vadd.f32 %v616, %v617
    %v619 = vrot.slane %v618, 1
    %v620 = vadd.f32 %v618, %v619
    %v621 = vsel %vm81, %v584, 0.0
    %v622 = vsel %vm81, %v585, 0.0
    %v623 = vadd.f32 %v621, %v622
    %v624 = vrot.slane %v623, 4
    %v625 = vadd.f32 %v623, %v624
    %v626 = vrot.slane %v625, 2
    %v627 = vadd.f32 %v625, %v626
    %v628 = vrot.slane %v627, 1
    %v629 = vadd.f32 %v627, %v628
    %v630 = vsel %vm81, %v586, 0.0
    %v631 = vsel %vm81, %v587, 0.0
    %v632 = vadd.f32 %v630, %v631
    %v633 = vrot.slane %v632, 4
    %v634 = vadd.f32 %v632, %v633
    %v635 = vrot.slane %v634, 2
    %v636 = vadd.f32 %v634, %v635
    %v637 = vrot.slane %v636, 1
    %v638 = vadd.f32 %v636, %v637
    %v639 = vsel %vm81, %v588, 0.0
    %v640 = vsel %vm81, %v589, 0.0
    %v641 = vadd.f32 %v639, %v640
    %v642 = vrot.slane %v641, 4
    %v643 = vadd.f32 %v641, %v642
    %v644 = vrot.slane %v643, 2
    %v645 = vadd.f32 %v643, %v644
    %v646 = vrot.slane %v645, 1
    %v647 = vadd.f32 %v645, %v646
    %v648 = vsel %vm81, %v590, 0.0
    %v649 = vsel %vm81, %v591, 0.0
    %v650 = vadd.f32 %v648, %v649
    %v651 = vrot.slane %v650, 4
    %v652 = vadd.f32 %v650, %v651
    %v653 = vrot.slane %v652, 2
    %v654 = vadd.f32 %v652, %v653
    %v655 = vrot.slane %v654, 1
    %v656 = vadd.f32 %v654, %v655
    %v657 = vsel %vm81, %v592, 0.0
    %v658 = vsel %vm81, %v593, 0.0
    %v659 = vadd.f32 %v657, %v658
    %v660 = vrot.slane %v659, 4
    %v661 = vadd.f32 %v659, %v660
    %v662 = vrot.slane %v661, 2
    %v663 = vadd.f32 %v661, %v662
    %v664 = vrot.slane %v663, 1
    %v665 = vadd.f32 %v663, %v664
    %v666 = vrcp.pop %v602
    %v667 = vrcp.pop %v611
    %v668 = vrcp.pop %v620
    %v669 = vrcp.pop %v629
    %v670 = vrcp.pop %v638
    %v671 = vrcp.pop %v647
    %v672 = vrcp.pop %v656
    %v673 = vrcp.pop %v665
    %v674 = vmul.f32 %v578, %v666
    %v675 = vmul.f32 %v579, %v666
    %v676 = vmul.f32 %v580, %v667
    %v677 = vmul.f32 %v581, %v667
    %v678 = vmul.f32 %v582, %v668
    %v679 = vmul.f32 %v583, %v668
    %v680 = vmul.f32 %v584, %v669
    %v681 = vmul.f32 %v585, %v669
    %v682 = vmul.f32 %v586, %v670
    %v683 = vmul.f32 %v587, %v670
    %v684 = vmul.f32 %v588, %v671
    %v685 = vmul.f32 %v589, %v671
    %v686 = vmul.f32 %v590, %v672
    %v687 = vmul.f32 %v591, %v672
    %v688 = vmul.f32 %v592, %v673
    %v689 = vmul.f32 %v593, %v673
    %v690 = vmul.f32 %v674, %v442
    %v691 = vmul.f32 %v675, %v443
    %v692 = vmul.f32 %v676, %v444
    %v693 = vmul.f32 %v677, %v445
    %v694 = vmul.f32 %v678, %v446
    %v695 = vmul.f32 %v679, %v447
    %v696 = vmul.f32 %v680, %v448
    %v697 = vmul.f32 %v681, %v449
    %v698 = vmul.f32 %v682, %v450
    %v699 = vmul.f32 %v683, %v451
    %v700 = vmul.f32 %v684, %v452
    %v701 = vmul.f32 %v685, %v453
    %v702 = vmul.f32 %v686, %v454
    %v703 = vmul.f32 %v687, %v455
    %v704 = vmul.f32 %v688, %v456
    %v705 = vmul.f32 %v689, %v457
    %v706 = vsel %vm81, %v690, 0.0
    %v707 = vsel %vm81, %v691, 0.0
    %v708 = vadd.f32 %v706, %v707
    %v709 = vrot.slane %v708, 4
    %v710 = vadd.f32 %v708, %v709
    %v711 = vrot.slane %v710, 2
    %v712 = vadd.f32 %v710, %v711
    %v713 = vrot.slane %v712, 1
    %v714 = vadd.f32 %v712, %v713
    %v715 = vsel %vm81, %v692, 0.0
    %v716 = vsel %vm81, %v693, 0.0
    %v717 = vadd.f32 %v715, %v716
    %v718 = vrot.slane %v717, 4
    %v719 = vadd.f32 %v717, %v718
    %v720 = vrot.slane %v719, 2
    %v721 = vadd.f32 %v719, %v720
    %v722 = vrot.slane %v721, 1
    %v723 = vadd.f32 %v721, %v722
    %v724 = vsel %vm81, %v694, 0.0
    %v725 = vsel %vm81, %v695, 0.0
    %v726 = vadd.f32 %v724, %v725
    %v727 = vrot.slane %v726, 4
    %v728 = vadd.f32 %v726, %v727
    %v729 = vrot.slane %v728, 2
    %v730 = vadd.f32 %v728, %v729
    %v731 = vrot.slane %v730, 1
    %v732 = vadd.f32 %v730, %v731
    %v733 = vsel %vm81, %v696, 0.0
    %v734 = vsel %vm81, %v697, 0.0
    %v735 = vadd.f32 %v733, %v734
    %v736 = vrot.slane %v735, 4
    %v737 = vadd.f32 %v735, %v736
    %v738 = vrot.slane %v737, 2
    %v739 = vadd.f32 %v737, %v738
    %v740 = vrot.slane %v739, 1
    %v741 = vadd.f32 %v739, %v740
    %v742 = vsel %vm81, %v698, 0.0
    %v743 = vsel %vm81, %v699, 0.0
    %v744 = vadd.f32 %v742, %v743
    %v745 = vrot.slane %v744, 4
    %v746 = vadd.f32 %v744, %v745
    %v747 = vrot.slane %v746, 2
    %v748 = vadd.f32 %v746, %v747
    %v749 = vrot.slane %v748, 1
    %v750 = vadd.f32 %v748, %v749
    %v751 = vsel %vm81, %v700, 0.0
    %v752 = vsel %vm81, %v701, 0.0
    %v753 = vadd.f32 %v751, %v752
    %v754 = vrot.slane %v753, 4
    %v755 = vadd.f32 %v753, %v754
    %v756 = vrot.slane %v755, 2
    %v757 = vadd.f32 %v755, %v756
    %v758 = vrot.slane %v757, 1
    %v759 = vadd.f32 %v757, %v758
    %v760 = vsel %vm81, %v702, 0.0
    %v761 = vsel %vm81, %v703, 0.0
    %v762 = vadd.f32 %v760, %v761
    %v763 = vrot.slane %v762, 4
    %v764 = vadd.f32 %v762, %v763
    %v765 = vrot.slane %v764, 2
    %v766 = vadd.f32 %v764, %v765
    %v767 = vrot.slane %v766, 1
    %v768 = vadd.f32 %v766, %v767
    %v769 = vsel %vm81, %v704, 0.0
    %v770 = vsel %vm81, %v705, 0.0
    %v771 = vadd.f32 %v769, %v770
    %v772 = vrot.slane %v771, 4
    %v773 = vadd.f32 %v771, %v772
    %v774 = vrot.slane %v773, 2
    %v775 = vadd.f32 %v773, %v774
    %v776 = vrot.slane %v775, 1
    %v777 = vadd.f32 %v775, %v776
    %v778 = vmul.f32 %v714, 0.1
    %v779 = vmul.f32 %v723, 0.1
    %v780 = vmul.f32 %v732, 0.1
    %v781 = vmul.f32 %v741, 0.1
    %v782 = vmul.f32 %v750, 0.1
    %v783 = vmul.f32 %v759, 0.1
    %v784 = vmul.f32 %v768, 0.1
    %v785 = vmul.f32 %v777, 0.1
    %v786 = vld [vmem:[#allocation6] sm:$0xff]
    %v787 = vld [vmem:[#allocation6 + $0x8] sm:$0xff]
    %v788 = vld [vmem:[#allocation6 + $0x10] sm:$0xff]
    %v789 = vld [vmem:[#allocation6 + $0x18] sm:$0xff]
    %v790 = vld [vmem:[#allocation6 + $0x20] sm:$0xff]
    %v791 = vld [vmem:[#allocation6 + $0x28] sm:$0xff]
    %v792 = vld [vmem:[#allocation6 + $0x30] sm:$0xff]
    %v793 = vld [vmem:[#allocation6 + $0x38] sm:$0xff]
    %v794 = vld [vmem:[#allocation6 + $0x40] sm:$0xff]
    %v795 = vld [vmem:[#allocation6 + $0x48] sm:$0xff]
    %v796 = vld [vmem:[#allocation6 + $0x50] sm:$0xff]
    %v797 = vld [vmem:[#allocation6 + $0x58] sm:$0xff]
    %v798 = vld [vmem:[#allocation6 + $0x60] sm:$0xff]
    %v799 = vld [vmem:[#allocation6 + $0x68] sm:$0xff]
    %v800 = vld [vmem:[#allocation6 + $0x70] sm:$0xff]
    %v801 = vld [vmem:[#allocation6 + $0x78] sm:$0xff]
    %vm802 = vcmask 130048
    %v804 = vsel %vm802, %v786, 0
    %v807 = vsel %vm802, %v787, 0
    %809 = vmatprep.subr.mxu0 0.0
    %810 = vmatpush1.msra.mxu0 %v674
    %811 = vmatprep.subr.mxu0 0.0
    %812 = vmatpush1.msra.mxu0 %v675
    %813 = vmatprep.subr.mxu0 0.0
    %814 = vmatpush1.msra.mxu0 0.0
    %815 = vmatprep.subr.mxu0 0.0
    %816 = vmatpush1.msra.mxu0 0.0
    %817 = vmatprep.subr.mxu0 0.0
    %818 = vmatpush1.msra.mxu0 0.0
    %819 = vmatprep.subr.mxu0 0.0
    %820 = vmatpush1.msra.mxu0 0.0
    %821 = vmatprep.subr.mxu0 0.0
    %822 = vmatpush1.msra.mxu0 0.0
    %823 = vmatprep.subr.mxu0 0.0
    %824 = vmatpush1.msra.mxu0 0.0
    %825 = vmatprep.subr.mxu0 0.0
    %826 = vmatpush1.msra.mxu0 0.0
    %827 = vmatprep.subr.mxu0 0.0
    %828 = vmatpush1.msra.mxu0 0.0
    %829 = vmatprep.subr.mxu0 0.0
    %830 = vmatpush1.msra.mxu0 0.0
    %831 = vmatprep.subr.mxu0 0.0
    %832 = vmatpush1.msra.mxu0 0.0
    %833 = vmatprep.subr.mxu0 0.0
    %834 = vmatpush1.msra.mxu0 0.0
    %835 = vmatprep.subr.mxu0 0.0
    %836 = vmatpush1.msra.mxu0 0.0
    %837 = vmatprep.subr.mxu0 0.0
    %838 = vmatpush1.msra.mxu0 0.0
    %839 = vmatprep.subr.mxu0 0.0
    %840 = vmatpush1.msra.mxu0 0.0
    %841 = vmatprep.subr.mxu0 0.0
    %842 = vmatpush1.msra.mxu0 0.0
    %843 = vmatprep.subr.mxu0 0.0
    %844 = vmatpush1.msra.mxu0 0.0
    %845 = vmatprep.subr.mxu0 0.0
    %846 = vmatpush1.msra.mxu0 0.0
    %847 = vmatprep.subr.mxu0 0.0
    %848 = vmatpush1.msra.mxu0 0.0
    %849 = vmatprep.subr.mxu0 0.0
    %850 = vmatpush1.msra.mxu0 0.0
    %851 = vmatprep.subr.mxu0 0.0
    %852 = vmatpush1.msra.mxu0 0.0
    %853 = vmatprep.subr.mxu0 0.0
    %854 = vmatpush1.msra.mxu0 0.0
    %855 = vmatprep.subr.mxu0 0.0
    %856 = vmatpush1.msra.mxu0 0.0
    %857 = vmatprep.subr.mxu0 0.0
    %858 = vmatpush1.msra.mxu0 0.0
    %859 = vmatprep.subr.mxu0 0.0
    %860 = vmatpush1.msra.mxu0 0.0
    %861 = vmatprep.subr.mxu0 0.0
    %862 = vmatpush1.msra.mxu0 0.0
    %863 = vmatprep.subr.mxu0 0.0
    %864 = vmatpush1.msra.mxu0 0.0
    %865 = vmatprep.subr.mxu0 0.0
    %866 = vmatpush1.msra.mxu0 0.0
    %867 = vmatprep.subr.mxu0 0.0
    %868 = vmatpush1.msra.mxu0 0.0
    %869 = vmatprep.subr.mxu0 0.0
    %870 = vmatpush1.msra.mxu0 0.0
    %871 = vmatprep.subr.mxu0 0.0
    %872 = vmatpush1.msra.mxu0 0.0
    %873 = vmatprep.mubr.f32.mxu0 0.0
    %874 = vmatmul.mubr.f32.gmra.mrb[0].mxu0 %v804
    %v875 = vpop.f32.mrb[0].mxu0
    %v876 = vadd.f32 0.0, %v875
    %v877 = vpop.f32.mrb[0].mxu0
    %878 = vmatprep.mubr.f32.mxu0 0.0
    %879 = vmatmul.mubr.f32.gmra.mrb[0].mxu0 %v807
    %v880 = vpop.f32.mrb[0].mxu0
    %v881 = vadd.f32 0.0, %v880
    %v882 = vpop.f32.mrb[0].mxu0
    %883 = vdwg.mxu0
    %v885 = vsel %vm802, %v788, 0
    %v888 = vsel %vm802, %v789, 0
    %890 = vmatprep.subr.mxu0 0.0
    %891 = vmatpush1.msra.mxu0 %v676
    %892 = vmatprep.subr.mxu0 0.0
    %893 = vmatpush1.msra.mxu0 %v677
    %894 = vmatprep.subr.mxu0 0.0
    %895 = vmatpush1.msra.mxu0 0.0
    %896 = vmatprep.subr.mxu0 0.0
    %897 = vmatpush1.msra.mxu0 0.0
    %898 = vmatprep.subr.mxu0 0.0
    %899 = vmatpush1.msra.mxu0 0.0
    %900 = vmatprep.subr.mxu0 0.0
    %901 = vmatpush1.msra.mxu0 0.0
    %902 = vmatprep.subr.mxu0 0.0
    %903 = vmatpush1.msra.mxu0 0.0
    %904 = vmatprep.subr.mxu0 0.0
    %905 = vmatpush1.msra.mxu0 0.0
    %906 = vmatprep.subr.mxu0 0.0
    %907 = vmatpush1.msra.mxu0 0.0
    %908 = vmatprep.subr.mxu0 0.0
    %909 = vmatpush1.msra.mxu0 0.0
    %910 = vmatprep.subr.mxu0 0.0
    %911 = vmatpush1.msra.mxu0 0.0
    %912 = vmatprep.subr.mxu0 0.0
    %913 = vmatpush1.msra.mxu0 0.0
    %914 = vmatprep.subr.mxu0 0.0
    %915 = vmatpush1.msra.mxu0 0.0
    %916 = vmatprep.subr.mxu0 0.0
    %917 = vmatpush1.msra.mxu0 0.0
    %918 = vmatprep.subr.mxu0 0.0
    %919 = vmatpush1.msra.mxu0 0.0
    %920 = vmatprep.subr.mxu0 0.0
    %921 = vmatpush1.msra.mxu0 0.0
    %922 = vmatprep.subr.mxu0 0.0
    %923 = vmatpush1.msra.mxu0 0.0
    %924 = vmatprep.subr.mxu0 0.0
    %925 = vmatpush1.msra.mxu0 0.0
    %926 = vmatprep.subr.mxu0 0.0
    %927 = vmatpush1.msra.mxu0 0.0
    %928 = vmatprep.subr.mxu0 0.0
    %929 = vmatpush1.msra.mxu0 0.0
    %930 = vmatprep.subr.mxu0 0.0
    %931 = vmatpush1.msra.mxu0 0.0
    %932 = vmatprep.subr.mxu0 0.0
    %933 = vmatpush1.msra.mxu0 0.0
    %934 = vmatprep.subr.mxu0 0.0
    %935 = vmatpush1.msra.mxu0 0.0
    %936 = vmatprep.subr.mxu0 0.0
    %937 = vmatpush1.msra.mxu0 0.0
    %938 = vmatprep.subr.mxu0 0.0
    %939 = vmatpush1.msra.mxu0 0.0
    %940 = vmatprep.subr.mxu0 0.0
    %941 = vmatpush1.msra.mxu0 0.0
    %942 = vmatprep.subr.mxu0 0.0
    %943 = vmatpush1.msra.mxu0 0.0
    %944 = vmatprep.subr.mxu0 0.0
    %945 = vmatpush1.msra.mxu0 0.0
    %946 = vmatprep.subr.mxu0 0.0
    %947 = vmatpush1.msra.mxu0 0.0
    %948 = vmatprep.subr.mxu0 0.0
    %949 = vmatpush1.msra.mxu0 0.0
    %950 = vmatprep.subr.mxu0 0.0
    %951 = vmatpush1.msra.mxu0 0.0
    %952 = vmatprep.subr.mxu0 0.0
    %953 = vmatpush1.msra.mxu0 0.0
    %954 = vmatprep.mubr.f32.mxu0 0.0
    %955 = vmatmul.mubr.f32.gmra.mrb[0].mxu0 %v885
    %v956 = vpop.f32.mrb[0].mxu0
    %v957 = vadd.f32 0.0, %v956
    %v958 = vpop.f32.mrb[0].mxu0
    %959 = vmatprep.mubr.f32.mxu0 0.0
    %960 = vmatmul.mubr.f32.gmra.mrb[0].mxu0 %v888
    %v961 = vpop.f32.mrb[0].mxu0
    %v962 = vadd.f32 0.0, %v961
    %v963 = vpop.f32.mrb[0].mxu0
    %964 = vdwg.mxu0
    %v966 = vsel %vm802, %v790, 0
    %v969 = vsel %vm802, %v791, 0
    %971 = vmatprep.subr.mxu0 0.0
    %972 = vmatpush1.msra.mxu0 %v678
    %973 = vmatprep.subr.mxu0 0.0
    %974 = vmatpush1.msra.mxu0 %v679
    %975 = vmatprep.subr.mxu0 0.0
    %976 = vmatpush1.msra.mxu0 0.0
    %977 = vmatprep.subr.mxu0 0.0
    %978 = vmatpush1.msra.mxu0 0.0
    %979 = vmatprep.subr.mxu0 0.0
    %980 = vmatpush1.msra.mxu0 0.0
    %981 = vmatprep.subr.mxu0 0.0
    %982 = vmatpush1.msra.mxu0 0.0
    %983 = vmatprep.subr.mxu0 0.0
    %984 = vmatpush1.msra.mxu0 0.0
    %985 = vmatprep.subr.mxu0 0.0
    %986 = vmatpush1.msra.mxu0 0.0
    %987 = vmatprep.subr.mxu0 0.0
    %988 = vmatpush1.msra.mxu0 0.0
    %989 = vmatprep.subr.mxu0 0.0
    %990 = vmatpush1.msra.mxu0 0.0
    %991 = vmatprep.subr.mxu0 0.0
    %992 = vmatpush1.msra.mxu0 0.0
    %993 = vmatprep.subr.mxu0 0.0
    %994 = vmatpush1.msra.mxu0 0.0
    %995 = vmatprep.subr.mxu0 0.0
    %996 = vmatpush1.msra.mxu0 0.0
    %997 = vmatprep.subr.mxu0 0.0
    %998 = vmatpush1.msra.mxu0 0.0
    %999 = vmatprep.subr.mxu0 0.0
    %1000 = vmatpush1.msra.mxu0 0.0
    %1001 = vmatprep.subr.mxu0 0.0
    %1002 = vmatpush1.msra.mxu0 0.0
    %1003 = vmatprep.subr.mxu0 0.0
    %1004 = vmatpush1.msra.mxu0 0.0
    %1005 = vmatprep.subr.mxu0 0.0
    %1006 = vmatpush1.msra.mxu0 0.0
    %1007 = vmatprep.subr.mxu0 0.0
    %1008 = vmatpush1.msra.mxu0 0.0
    %1009 = vmatprep.subr.mxu0 0.0
    %1010 = vmatpush1.msra.mxu0 0.0
    %1011 = vmatprep.subr.mxu0 0.0
    %1012 = vmatpush1.msra.mxu0 0.0
    %1013 = vmatprep.subr.mxu0 0.0
    %1014 = vmatpush1.msra.mxu0 0.0
    %1015 = vmatprep.subr.mxu0 0.0
    %1016 = vmatpush1.msra.mxu0 0.0
    %1017 = vmatprep.subr.mxu0 0.0
    %1018 = vmatpush1.msra.mxu0 0.0
    %1019 = vmatprep.subr.mxu0 0.0
    %1020 = vmatpush1.msra.mxu0 0.0
    %1021 = vmatprep.subr.mxu0 0.0
    %1022 = vmatpush1.msra.mxu0 0.0
    %1023 = vmatprep.subr.mxu0 0.0
    %1024 = vmatpush1.msra.mxu0 0.0
    %1025 = vmatprep.subr.mxu0 0.0
    %1026 = vmatpush1.msra.mxu0 0.0
    %1027 = vmatprep.subr.mxu0 0.0
    %1028 = vmatpush1.msra.mxu0 0.0
    %1029 = vmatprep.subr.mxu0 0.0
    %1030 = vmatpush1.msra.mxu0 0.0
    %1031 = vmatprep.subr.mxu0 0.0
    %1032 = vmatpush1.msra.mxu0 0.0
    %1033 = vmatprep.subr.mxu0 0.0
    %1034 = vmatpush1.msra.mxu0 0.0
    %1035 = vmatprep.mubr.f32.mxu0 0.0
    %1036 = vmatmul.mubr.f32.gmra.mrb[0].mxu0 %v966
    %v1037 = vpop.f32.mrb[0].mxu0
    %v1038 = vadd.f32 0.0, %v1037
    %v1039 = vpop.f32.mrb[0].mxu0
    %1040 = vmatprep.mubr.f32.mxu0 0.0
    %1041 = vmatmul.mubr.f32.gmra.mrb[0].mxu0 %v969
    %v1042 = vpop.f32.mrb[0].mxu0
    %v1043 = vadd.f32 0.0, %v1042
    %v1044 = vpop.f32.mrb[0].mxu0
    %1045 = vdwg.mxu0
    %v1047 = vsel %vm802, %v792, 0
    %v1050 = vsel %vm802, %v793, 0
    %1052 = vmatprep.subr.mxu0 0.0
    %1053 = vmatpush1.msra.mxu0 %v680
    %1054 = vmatprep.subr.mxu0 0.0
    %1055 = vmatpush1.msra.mxu0 %v681
    %1056 = vmatprep.subr.mxu0 0.0
    %1057 = vmatpush1.msra.mxu0 0.0
    %1058 = vmatprep.subr.mxu0 0.0
    %1059 = vmatpush1.msra.mxu0 0.0
    %1060 = vmatprep.subr.mxu0 0.0
    %1061 = vmatpush1.msra.mxu0 0.0
    %1062 = vmatprep.subr.mxu0 0.0
    %1063 = vmatpush1.msra.mxu0 0.0
    %1064 = vmatprep.subr.mxu0 0.0
    %1065 = vmatpush1.msra.mxu0 0.0
    %1066 = vmatprep.subr.mxu0 0.0
    %1067 = vmatpush1.msra.mxu0 0.0
    %1068 = vmatprep.subr.mxu0 0.0
    %1069 = vmatpush1.msra.mxu0 0.0
    %1070 = vmatprep.subr.mxu0 0.0
    %1071 = vmatpush1.msra.mxu0 0.0
    %1072 = vmatprep.subr.mxu0 0.0
    %1073 = vmatpush1.msra.mxu0 0.0
    %1074 = vmatprep.subr.mxu0 0.0
    %1075 = vmatpush1.msra.mxu0 0.0
    %1076 = vmatprep.subr.mxu0 0.0
    %1077 = vmatpush1.msra.mxu0 0.0
    %1078 = vmatprep.subr.mxu0 0.0
    %1079 = vmatpush1.msra.mxu0 0.0
    %1080 = vmatprep.subr.mxu0 0.0
    %1081 = vmatpush1.msra.mxu0 0.0
    %1082 = vmatprep.subr.mxu0 0.0
    %1083 = vmatpush1.msra.mxu0 0.0
    %1084 = vmatprep.subr.mxu0 0.0
    %1085 = vmatpush1.msra.mxu0 0.0
    %1086 = vmatprep.subr.mxu0 0.0
    %1087 = vmatpush1.msra.mxu0 0.0
    %1088 = vmatprep.subr.mxu0 0.0
    %1089 = vmatpush1.msra.mxu0 0.0
    %1090 = vmatprep.subr.mxu0 0.0
    %1091 = vmatpush1.msra.mxu0 0.0
    %1092 = vmatprep.subr.mxu0 0.0
    %1093 = vmatpush1.msra.mxu0 0.0
    %1094 = vmatprep.subr.mxu0 0.0
    %1095 = vmatpush1.msra.mxu0 0.0
    %1096 = vmatprep.subr.mxu0 0.0
    %1097 = vmatpush1.msra.mxu0 0.0
    %1098 = vmatprep.subr.mxu0 0.0
    %1099 = vmatpush1.msra.mxu0 0.0
    %1100 = vmatprep.subr.mxu0 0.0
    %1101 = vmatpush1.msra.mxu0 0.0
    %1102 = vmatprep.subr.mxu0 0.0
    %1103 = vmatpush1.msra.mxu0 0.0
    %1104 = vmatprep.subr.mxu0 0.0
    %1105 = vmatpush1.msra.mxu0 0.0
    %1106 = vmatprep.subr.mxu0 0.0
    %1107 = vmatpush1.msra.mxu0 0.0
    %1108 = vmatprep.subr.mxu0 0.0
    %1109 = vmatpush1.msra.mxu0 0.0
    %1110 = vmatprep.subr.mxu0 0.0
    %1111 = vmatpush1.msra.mxu0 0.0
    %1112 = vmatprep.subr.mxu0 0.0
    %1113 = vmatpush1.msra.mxu0 0.0
    %1114 = vmatprep.subr.mxu0 0.0
    %1115 = vmatpush1.msra.mxu0 0.0
    %1116 = vmatprep.mubr.f32.mxu0 0.0
    %1117 = vmatmul.mubr.f32.gmra.mrb[0].mxu0 %v1047
    %v1118 = vpop.f32.mrb[0].mxu0
    %v1119 = vadd.f32 0.0, %v1118
    %v1120 = vpop.f32.mrb[0].mxu0
    %1121 = vmatprep.mubr.f32.mxu0 0.0
    %1122 = vmatmul.mubr.f32.gmra.mrb[0].mxu0 %v1050
    %v1123 = vpop.f32.mrb[0].mxu0
    %v1124 = vadd.f32 0.0, %v1123
    %v1125 = vpop.f32.mrb[0].mxu0
    %1126 = vdwg.mxu0
    %v1128 = vsel %vm802, %v794, 0
    %v1131 = vsel %vm802, %v795, 0
    %1133 = vmatprep.subr.mxu0 0.0
    %1134 = vmatpush1.msra.mxu0 %v682
    %1135 = vmatprep.subr.mxu0 0.0
    %1136 = vmatpush1.msra.mxu0 %v683
    %1137 = vmatprep.subr.mxu0 0.0
    %1138 = vmatpush1.msra.mxu0 0.0
    %1139 = vmatprep.subr.mxu0 0.0
    %1140 = vmatpush1.msra.mxu0 0.0
    %1141 = vmatprep.subr.mxu0 0.0
    %1142 = vmatpush1.msra.mxu0 0.0
    %1143 = vmatprep.subr.mxu0 0.0
    %1144 = vmatpush1.msra.mxu0 0.0
    %1145 = vmatprep.subr.mxu0 0.0
    %1146 = vmatpush1.msra.mxu0 0.0
    %1147 = vmatprep.subr.mxu0 0.0
    %1148 = vmatpush1.msra.mxu0 0.0
    %1149 = vmatprep.subr.mxu0 0.0
    %1150 = vmatpush1.msra.mxu0 0.0
    %1151 = vmatprep.subr.mxu0 0.0
    %1152 = vmatpush1.msra.mxu0 0.0
    %1153 = vmatprep.subr.mxu0 0.0
    %1154 = vmatpush1.msra.mxu0 0.0
    %1155 = vmatprep.subr.mxu0 0.0
    %1156 = vmatpush1.msra.mxu0 0.0
    %1157 = vmatprep.subr.mxu0 0.0
    %1158 = vmatpush1.msra.mxu0 0.0
    %1159 = vmatprep.subr.mxu0 0.0
    %1160 = vmatpush1.msra.mxu0 0.0
    %1161 = vmatprep.subr.mxu0 0.0
    %1162 = vmatpush1.msra.mxu0 0.0
    %1163 = vmatprep.subr.mxu0 0.0
    %1164 = vmatpush1.msra.mxu0 0.0
    %1165 = vmatprep.subr.mxu0 0.0
    %1166 = vmatpush1.msra.mxu0 0.0
    %1167 = vmatprep.subr.mxu0 0.0
    %1168 = vmatpush1.msra.mxu0 0.0
    %1169 = vmatprep.subr.mxu0 0.0
    %1170 = vmatpush1.msra.mxu0 0.0
    %1171 = vmatprep.subr.mxu0 0.0
    %1172 = vmatpush1.msra.mxu0 0.0
    %1173 = vmatprep.subr.mxu0 0.0
    %1174 = vmatpush1.msra.mxu0 0.0
    %1175 = vmatprep.subr.mxu0 0.0
    %1176 = vmatpush1.msra.mxu0 0.0
    %1177 = vmatprep.subr.mxu0 0.0
    %1178 = vmatpush1.msra.mxu0 0.0
    %1179 = vmatprep.subr.mxu0 0.0
    %1180 = vmatpush1.msra.mxu0 0.0
    %1181 = vmatprep.subr.mxu0 0.0
    %1182 = vmatpush1.msra.mxu0 0.0
    %1183 = vmatprep.subr.mxu0 0.0
    %1184 = vmatpush1.msra.mxu0 0.0
    %1185 = vmatprep.subr.mxu0 0.0
    %1186 = vmatpush1.msra.mxu0 0.0
    %1187 = vmatprep.subr.mxu0 0.0
    %1188 = vmatpush1.msra.mxu0 0.0
    %1189 = vmatprep.subr.mxu0 0.0
    %1190 = vmatpush1.msra.mxu0 0.0
    %1191 = vmatprep.subr.mxu0 0.0
    %1192 = vmatpush1.msra.mxu0 0.0
    %1193 = vmatprep.subr.mxu0 0.0
    %1194 = vmatpush1.msra.mxu0 0.0
    %1195 = vmatprep.subr.mxu0 0.0
    %1196 = vmatpush1.msra.mxu0 0.0
    %1197 = vmatprep.mubr.f32.mxu0 0.0
    %1198 = vmatmul.mubr.f32.gmra.mrb[0].mxu0 %v1128
    %v1199 = vpop.f32.mrb[0].mxu0
    %v1200 = vadd.f32 0.0, %v1199
    %v1201 = vpop.f32.mrb[0].mxu0
    %1202 = vmatprep.mubr.f32.mxu0 0.0
    %1203 = vmatmul.mubr.f32.gmra.mrb[0].mxu0 %v1131
    %v1204 = vpop.f32.mrb[0].mxu0
    %v1205 = vadd.f32 0.0, %v1204
    %v1206 = vpop.f32.mrb[0].mxu0
    %1207 = vdwg.mxu0
    %v1209 = vsel %vm802, %v796, 0
    %v1212 = vsel %vm802, %v797, 0
    %1214 = vmatprep.subr.mxu0 0.0
    %1215 = vmatpush1.msra.mxu0 %v684
    %1216 = vmatprep.subr.mxu0 0.0
    %1217 = vmatpush1.msra.mxu0 %v685
    %1218 = vmatprep.subr.mxu0 0.0
    %1219 = vmatpush1.msra.mxu0 0.0
    %1220 = vmatprep.subr.mxu0 0.0
    %1221 = vmatpush1.msra.mxu0 0.0
    %1222 = vmatprep.subr.mxu0 0.0
    %1223 = vmatpush1.msra.mxu0 0.0
    %1224 = vmatprep.subr.mxu0 0.0
    %1225 = vmatpush1.msra.mxu0 0.0
    %1226 = vmatprep.subr.mxu0 0.0
    %1227 = vmatpush1.msra.mxu0 0.0
    %1228 = vmatprep.subr.mxu0 0.0
    %1229 = vmatpush1.msra.mxu0 0.0
    %1230 = vmatprep.subr.mxu0 0.0
    %1231 = vmatpush1.msra.mxu0 0.0
    %1232 = vmatprep.subr.mxu0 0.0
    %1233 = vmatpush1.msra.mxu0 0.0
    %1234 = vmatprep.subr.mxu0 0.0
    %1235 = vmatpush1.msra.mxu0 0.0
    %1236 = vmatprep.subr.mxu0 0.0
    %1237 = vmatpush1.msra.mxu0 0.0
    %1238 = vmatprep.subr.mxu0 0.0
    %1239 = vmatpush1.msra.mxu0 0.0
    %1240 = vmatprep.subr.mxu0 0.0
    %1241 = vmatpush1.msra.mxu0 0.0
    %1242 = vmatprep.subr.mxu0 0.0
    %1243 = vmatpush1.msra.mxu0 0.0
    %1244 = vmatprep.subr.mxu0 0.0
    %1245 = vmatpush1.msra.mxu0 0.0
    %1246 = vmatprep.subr.mxu0 0.0
    %1247 = vmatpush1.msra.mxu0 0.0
    %1248 = vmatprep.subr.mxu0 0.0
    %1249 = vmatpush1.msra.mxu0 0.0
    %1250 = vmatprep.subr.mxu0 0.0
    %1251 = vmatpush1.msra.mxu0 0.0
    %1252 = vmatprep.subr.mxu0 0.0
    %1253 = vmatpush1.msra.mxu0 0.0
    %1254 = vmatprep.subr.mxu0 0.0
    %1255 = vmatpush1.msra.mxu0 0.0
    %1256 = vmatprep.subr.mxu0 0.0
    %1257 = vmatpush1.msra.mxu0 0.0
    %1258 = vmatprep.subr.mxu0 0.0
    %1259 = vmatpush1.msra.mxu0 0.0
    %1260 = vmatprep.subr.mxu0 0.0
    %1261 = vmatpush1.msra.mxu0 0.0
    %1262 = vmatprep.subr.mxu0 0.0
    %1263 = vmatpush1.msra.mxu0 0.0
    %1264 = vmatprep.subr.mxu0 0.0
    %1265 = vmatpush1.msra.mxu0 0.0
    %1266 = vmatprep.subr.mxu0 0.0
    %1267 = vmatpush1.msra.mxu0 0.0
    %1268 = vmatprep.subr.mxu0 0.0
    %1269 = vmatpush1.msra.mxu0 0.0
    %1270 = vmatprep.subr.mxu0 0.0
    %1271 = vmatpush1.msra.mxu0 0.0
    %1272 = vmatprep.subr.mxu0 0.0
    %1273 = vmatpush1.msra.mxu0 0.0
    %1274 = vmatprep.subr.mxu0 0.0
    %1275 = vmatpush1.msra.mxu0 0.0
    %1276 = vmatprep.subr.mxu0 0.0
    %1277 = vmatpush1.msra.mxu0 0.0
    %1278 = vmatprep.mubr.f32.mxu0 0.0
    %1279 = vmatmul.mubr.f32.gmra.mrb[0].mxu0 %v1209
    %v1280 = vpop.f32.mrb[0].mxu0
    %v1281 = vadd.f32 0.0, %v1280
    %v1282 = vpop.f32.mrb[0].mxu0
    %1283 = vmatprep.mubr.f32.mxu0 0.0
    %1284 = vmatmul.mubr.f32.gmra.mrb[0].mxu0 %v1212
    %v1285 = vpop.f32.mrb[0].mxu0
    %v1286 = vadd.f32 0.0, %v1285
    %v1287 = vpop.f32.mrb[0].mxu0
    %1288 = vdwg.mxu0
    %v1290 = vsel %vm802, %v798, 0
    %v1293 = vsel %vm802, %v799, 0
    %1295 = vmatprep.subr.mxu0 0.0
    %1296 = vmatpush1.msra.mxu0 %v686
    %1297 = vmatprep.subr.mxu0 0.0
    %1298 = vmatpush1.msra.mxu0 %v687
    %1299 = vmatprep.subr.mxu0 0.0
    %1300 = vmatpush1.msra.mxu0 0.0
    %1301 = vmatprep.subr.mxu0 0.0
    %1302 = vmatpush1.msra.mxu0 0.0
    %1303 = vmatprep.subr.mxu0 0.0
    %1304 = vmatpush1.msra.mxu0 0.0
    %1305 = vmatprep.subr.mxu0 0.0
    %1306 = vmatpush1.msra.mxu0 0.0
    %1307 = vmatprep.subr.mxu0 0.0
    %1308 = vmatpush1.msra.mxu0 0.0
    %1309 = vmatprep.subr.mxu0 0.0
    %1310 = vmatpush1.msra.mxu0 0.0
    %1311 = vmatprep.subr.mxu0 0.0
    %1312 = vmatpush1.msra.mxu0 0.0
    %1313 = vmatprep.subr.mxu0 0.0
    %1314 = vmatpush1.msra.mxu0 0.0
    %1315 = vmatprep.subr.mxu0 0.0
    %1316 = vmatpush1.msra.mxu0 0.0
    %1317 = vmatprep.subr.mxu0 0.0
    %1318 = vmatpush1.msra.mxu0 0.0
    %1319 = vmatprep.subr.mxu0 0.0
    %1320 = vmatpush1.msra.mxu0 0.0
    %1321 = vmatprep.subr.mxu0 0.0
    %1322 = vmatpush1.msra.mxu0 0.0
    %1323 = vmatprep.subr.mxu0 0.0
    %1324 = vmatpush1.msra.mxu0 0.0
    %1325 = vmatprep.subr.mxu0 0.0
    %1326 = vmatpush1.msra.mxu0 0.0
    %1327 = vmatprep.subr.mxu0 0.0
    %1328 = vmatpush1.msra.mxu0 0.0
    %1329 = vmatprep.subr.mxu0 0.0
    %1330 = vmatpush1.msra.mxu0 0.0
    %1331 = vmatprep.subr.mxu0 0.0
    %1332 = vmatpush1.msra.mxu0 0.0
    %1333 = vmatprep.subr.mxu0 0.0
    %1334 = vmatpush1.msra.mxu0 0.0
    %1335 = vmatprep.subr.mxu0 0.0
    %1336 = vmatpush1.msra.mxu0 0.0
    %1337 = vmatprep.subr.mxu0 0.0
    %1338 = vmatpush1.msra.mxu0 0.0
    %1339 = vmatprep.subr.mxu0 0.0
    %1340 = vmatpush1.msra.mxu0 0.0
    %1341 = vmatprep.subr.mxu0 0.0
    %1342 = vmatpush1.msra.mxu0 0.0
    %1343 = vmatprep.subr.mxu0 0.0
    %1344 = vmatpush1.msra.mxu0 0.0
    %1345 = vmatprep.subr.mxu0 0.0
    %1346 = vmatpush1.msra.mxu0 0.0
    %1347 = vmatprep.subr.mxu0 0.0
    %1348 = vmatpush1.msra.mxu0 0.0
    %1349 = vmatprep.subr.mxu0 0.0
    %1350 = vmatpush1.msra.mxu0 0.0
    %1351 = vmatprep.subr.mxu0 0.0
    %1352 = vmatpush1.msra.mxu0 0.0
    %1353 = vmatprep.subr.mxu0 0.0
    %1354 = vmatpush1.msra.mxu0 0.0
    %1355 = vmatprep.subr.mxu0 0.0
    %1356 = vmatpush1.msra.mxu0 0.0
    %1357 = vmatprep.subr.mxu0 0.0
    %1358 = vmatpush1.msra.mxu0 0.0
    %1359 = vmatprep.mubr.f32.mxu0 0.0
    %1360 = vmatmul.mubr.f32.gmra.mrb[0].mxu0 %v1290
    %v1361 = vpop.f32.mrb[0].mxu0
    %v1362 = vadd.f32 0.0, %v1361
    %v1363 = vpop.f32.mrb[0].mxu0
    %1364 = vmatprep.mubr.f32.mxu0 0.0
    %1365 = vmatmul.mubr.f32.gmra.mrb[0].mxu0 %v1293
    %v1366 = vpop.f32.mrb[0].mxu0
    %v1367 = vadd.f32 0.0, %v1366
    %v1368 = vpop.f32.mrb[0].mxu0
    %1369 = vdwg.mxu0
    %v1371 = vsel %vm802, %v800, 0
    %v1374 = vsel %vm802, %v801, 0
    %1376 = vmatprep.subr.mxu0 0.0
    %1377 = vmatpush1.msra.mxu0 %v688
    %1378 = vmatprep.subr.mxu0 0.0
    %1379 = vmatpush1.msra.mxu0 %v689
    %1380 = vmatprep.subr.mxu0 0.0
    %1381 = vmatpush1.msra.mxu0 0.0
    %1382 = vmatprep.subr.mxu0 0.0
    %1383 = vmatpush1.msra.mxu0 0.0
    %1384 = vmatprep.subr.mxu0 0.0
    %1385 = vmatpush1.msra.mxu0 0.0
    %1386 = vmatprep.subr.mxu0 0.0
    %1387 = vmatpush1.msra.mxu0 0.0
    %1388 = vmatprep.subr.mxu0 0.0
    %1389 = vmatpush1.msra.mxu0 0.0
    %1390 = vmatprep.subr.mxu0 0.0
    %1391 = vmatpush1.msra.mxu0 0.0
    %1392 = vmatprep.subr.mxu0 0.0
    %1393 = vmatpush1.msra.mxu0 0.0
    %1394 = vmatprep.subr.mxu0 0.0
    %1395 = vmatpush1.msra.mxu0 0.0
    %1396 = vmatprep.subr.mxu0 0.0
    %1397 = vmatpush1.msra.mxu0 0.0
    %1398 = vmatprep.subr.mxu0 0.0
    %1399 = vmatpush1.msra.mxu0 0.0
    %1400 = vmatprep.subr.mxu0 0.0
    %1401 = vmatpush1.msra.mxu0 0.0
    %1402 = vmatprep.subr.mxu0 0.0
    %1403 = vmatpush1.msra.mxu0 0.0
    %1404 = vmatprep.subr.mxu0 0.0
    %1405 = vmatpush1.msra.mxu0 0.0
    %1406 = vmatprep.subr.mxu0 0.0
    %1407 = vmatpush1.msra.mxu0 0.0
    %1408 = vmatprep.subr.mxu0 0.0
    %1409 = vmatpush1.msra.mxu0 0.0
    %1410 = vmatprep.subr.mxu0 0.0
    %1411 = vmatpush1.msra.mxu0 0.0
    %1412 = vmatprep.subr.mxu0 0.0
    %1413 = vmatpush1.msra.mxu0 0.0
    %1414 = vmatprep.subr.mxu0 0.0
    %1415 = vmatpush1.msra.mxu0 0.0
    %1416 = vmatprep.subr.mxu0 0.0
    %1417 = vmatpush1.msra.mxu0 0.0
    %1418 = vmatprep.subr.mxu0 0.0
    %1419 = vmatpush1.msra.mxu0 0.0
    %1420 = vmatprep.subr.mxu0 0.0
    %1421 = vmatpush1.msra.mxu0 0.0
    %1422 = vmatprep.subr.mxu0 0.0
    %1423 = vmatpush1.msra.mxu0 0.0
    %1424 = vmatprep.subr.mxu0 0.0
    %1425 = vmatpush1.msra.mxu0 0.0
    %1426 = vmatprep.subr.mxu0 0.0
    %1427 = vmatpush1.msra.mxu0 0.0
    %1428 = vmatprep.subr.mxu0 0.0
    %1429 = vmatpush1.msra.mxu0 0.0
    %1430 = vmatprep.subr.mxu0 0.0
    %1431 = vmatpush1.msra.mxu0 0.0
    %1432 = vmatprep.subr.mxu0 0.0
    %1433 = vmatpush1.msra.mxu0 0.0
    %1434 = vmatprep.subr.mxu0 0.0
    %1435 = vmatpush1.msra.mxu0 0.0
    %1436 = vmatprep.subr.mxu0 0.0
    %1437 = vmatpush1.msra.mxu0 0.0
    %1438 = vmatprep.subr.mxu0 0.0
    %1439 = vmatpush1.msra.mxu0 0.0
    %1440 = vmatprep.mubr.f32.mxu0 0.0
    %1441 = vmatmul.mubr.f32.gmra.mrb[0].mxu0 %v1371
    %v1442 = vpop.f32.mrb[0].mxu0
    %v1443 = vadd.f32 0.0, %v1442
    %v1444 = vpop.f32.mrb[0].mxu0
    %1445 = vmatprep.mubr.f32.mxu0 0.0
    %1446 = vmatmul.mubr.f32.gmra.mrb[0].mxu0 %v1374
    %v1447 = vpop.f32.mrb[0].mxu0
    %v1448 = vadd.f32 0.0, %v1447
    %v1449 = vpop.f32.mrb[0].mxu0
    %1450 = vdwg.mxu0
    %v1451 = vmul.f32 %v674, %v876
    %v1452 = vmul.f32 %v675, %v881
    %v1453 = vmul.f32 %v676, %v957
    %v1454 = vmul.f32 %v677, %v962
    %v1455 = vmul.f32 %v678, %v1038
    %v1456 = vmul.f32 %v679, %v1043
    %v1457 = vmul.f32 %v680, %v1119
    %v1458 = vmul.f32 %v681, %v1124
    %v1459 = vmul.f32 %v682, %v1200
    %v1460 = vmul.f32 %v683, %v1205
    %v1461 = vmul.f32 %v684, %v1281
    %v1462 = vmul.f32 %v685, %v1286
    %v1463 = vmul.f32 %v686, %v1362
    %v1464 = vmul.f32 %v687, %v1367
    %v1465 = vmul.f32 %v688, %v1443
    %v1466 = vmul.f32 %v689, %v1448
    %v1467 = vsel %vm81, %v1451, 0.0
    %v1468 = vsel %vm81, %v1452, 0.0
    %v1469 = vadd.f32 %v1467, %v1468
    %v1470 = vrot.slane %v1469, 4
    %v1471 = vadd.f32 %v1469, %v1470
    %v1472 = vrot.slane %v1471, 2
    %v1473 = vadd.f32 %v1471, %v1472
    %v1474 = vrot.slane %v1473, 1
    %v1475 = vadd.f32 %v1473, %v1474
    %v1476 = vsel %vm81, %v1453, 0.0
    %v1477 = vsel %vm81, %v1454, 0.0
    %v1478 = vadd.f32 %v1476, %v1477
    %v1479 = vrot.slane %v1478, 4
    %v1480 = vadd.f32 %v1478, %v1479
    %v1481 = vrot.slane %v1480, 2
    %v1482 = vadd.f32 %v1480, %v1481
    %v1483 = vrot.slane %v1482, 1
    %v1484 = vadd.f32 %v1482, %v1483
    %v1485 = vsel %vm81, %v1455, 0.0
    %v1486 = vsel %vm81, %v1456, 0.0
    %v1487 = vadd.f32 %v1485, %v1486
    %v1488 = vrot.slane %v1487, 4
    %v1489 = vadd.f32 %v1487, %v1488
    %v1490 = vrot.slane %v1489, 2
    %v1491 = vadd.f32 %v1489, %v1490
    %v1492 = vrot.slane %v1491, 1
    %v1493 = vadd.f32 %v1491, %v1492
    %v1494 = vsel %vm81, %v1457, 0.0
    %v1495 = vsel %vm81, %v1458, 0.0
    %v1496 = vadd.f32 %v1494, %v1495
    %v1497 = vrot.slane %v1496, 4
    %v1498 = vadd.f32 %v1496, %v1497
    %v1499 = vrot.slane %v1498, 2
    %v1500 = vadd.f32 %v1498, %v1499
    %v1501 = vrot.slane %v1500, 1
    %v1502 = vadd.f32 %v1500, %v1501
    %v1503 = vsel %vm81, %v1459, 0.0
    %v1504 = vsel %vm81, %v1460, 0.0
    %v1505 = vadd.f32 %v1503, %v1504
    %v1506 = vrot.slane %v1505, 4
    %v1507 = vadd.f32 %v1505, %v1506
    %v1508 = vrot.slane %v1507, 2
    %v1509 = vadd.f32 %v1507, %v1508
    %v1510 = vrot.slane %v1509, 1
    %v1511 = vadd.f32 %v1509, %v1510
    %v1512 = vsel %vm81, %v1461, 0.0
    %v1513 = vsel %vm81, %v1462, 0.0
    %v1514 = vadd.f32 %v1512, %v1513
    %v1515 = vrot.slane %v1514, 4
    %v1516 = vadd.f32 %v1514, %v1515
    %v1517 = vrot.slane %v1516, 2
    %v1518 = vadd.f32 %v1516, %v1517
    %v1519 = vrot.slane %v1518, 1
    %v1520 = vadd.f32 %v1518, %v1519
    %v1521 = vsel %vm81, %v1463, 0.0
    %v1522 = vsel %vm81, %v1464, 0.0
    %v1523 = vadd.f32 %v1521, %v1522
    %v1524 = vrot.slane %v1523, 4
    %v1525 = vadd.f32 %v1523, %v1524
    %v1526 = vrot.slane %v1525, 2
    %v1527 = vadd.f32 %v1525, %v1526
    %v1528 = vrot.slane %v1527, 1
    %v1529 = vadd.f32 %v1527, %v1528
    %v1530 = vsel %vm81, %v1465, 0.0
    %v1531 = vsel %vm81, %v1466, 0.0
    %v1532 = vadd.f32 %v1530, %v1531
    %v1533 = vrot.slane %v1532, 4
    %v1534 = vadd.f32 %v1532, %v1533
    %v1535 = vrot.slane %v1534, 2
    %v1536 = vadd.f32 %v1534, %v1535
    %v1537 = vrot.slane %v1536, 1
    %v1538 = vadd.f32 %v1536, %v1537
    %v1539 = vmax.f32 %v1475, 0.0
    %v1540 = vmax.f32 %v1484, 0.0
    %v1541 = vmax.f32 %v1493, 0.0
    %v1542 = vmax.f32 %v1502, 0.0
    %v1543 = vmax.f32 %v1511, 0.0
    %v1544 = vmax.f32 %v1520, 0.0
    %v1545 = vmax.f32 %v1529, 0.0
    %v1546 = vmax.f32 %v1538, 0.0
    %v1547 = vrsqrt.pop %v1539
    %v1548 = vmul.f32 %v1539, %v1547
    %vm1549 = vcmp.eq.f32.partialorder %v1539, inf
    %v1550 = vsel %vm1549, %v1539, %v1548
    %vm1551 = vcmp.eq.f32.partialorder %v1539, 0.0
    %v1552 = vand.u32 %v1539, 2147483648
    %v1553 = vsel %vm1551, %v1552, %v1550
    %v1554 = vrsqrt.pop %v1540
    %v1555 = vmul.f32 %v1540, %v1554
    %vm1556 = vcmp.eq.f32.partialorder %v1540, inf
    %v1557 = vsel %vm1556, %v1540, %v1555
    %vm1558 = vcmp.eq.f32.partialorder %v1540, 0.0
    %v1559 = vand.u32 %v1540, 2147483648
    %v1560 = vsel %vm1558, %v1559, %v1557
    %v1561 = vrsqrt.pop %v1541
    %v1562 = vmul.f32 %v1541, %v1561
    %vm1563 = vcmp.eq.f32.partialorder %v1541, inf
    %v1564 = vsel %vm1563, %v1541, %v1562
    %vm1565 = vcmp.eq.f32.partialorder %v1541, 0.0
    %v1566 = vand.u32 %v1541, 2147483648
    %v1567 = vsel %vm1565, %v1566, %v1564
    %v1568 = vrsqrt.pop %v1542
    %v1569 = vmul.f32 %v1542, %v1568
    %vm1570 = vcmp.eq.f32.partialorder %v1542, inf
    %v1571 = vsel %vm1570, %v1542, %v1569
    %vm1572 = vcmp.eq.f32.partialorder %v1542, 0.0
    %v1573 = vand.u32 %v1542, 2147483648
    %v1574 = vsel %vm1572, %v1573, %v1571
    %v1575 = vrsqrt.pop %v1543
    %v1576 = vmul.f32 %v1543, %v1575
    %vm1577 = vcmp.eq.f32.partialorder %v1543, inf
    %v1578 = vsel %vm1577, %v1543, %v1576
    %vm1579 = vcmp.eq.f32.partialorder %v1543, 0.0
    %v1580 = vand.u32 %v1543, 2147483648
    %v1581 = vsel %vm1579, %v1580, %v1578
    %v1582 = vrsqrt.pop %v1544
    %v1583 = vmul.f32 %v1544, %v1582
    %vm1584 = vcmp.eq.f32.partialorder %v1544, inf
    %v1585 = vsel %vm1584, %v1544, %v1583
    %vm1586 = vcmp.eq.f32.partialorder %v1544, 0.0
    %v1587 = vand.u32 %v1544, 2147483648
    %v1588 = vsel %vm1586, %v1587, %v1585
    %v1589 = vrsqrt.pop %v1545
    %v1590 = vmul.f32 %v1545, %v1589
    %vm1591 = vcmp.eq.f32.partialorder %v1545, inf
    %v1592 = vsel %vm1591, %v1545, %v1590
    %vm1593 = vcmp.eq.f32.partialorder %v1545, 0.0
    %v1594 = vand.u32 %v1545, 2147483648
    %v1595 = vsel %vm1593, %v1594, %v1592
    %v1596 = vrsqrt.pop %v1546
    %v1597 = vmul.f32 %v1546, %v1596
    %vm1598 = vcmp.eq.f32.partialorder %v1546, inf
    %v1599 = vsel %vm1598, %v1546, %v1597
    %vm1600 = vcmp.eq.f32.partialorder %v1546, 0.0
    %v1601 = vand.u32 %v1546, 2147483648
    %v1602 = vsel %vm1600, %v1601, %v1599
    %v1603 = vadd.f32 %v1553, 1e-08
    %v1604 = vadd.f32 %v1560, 1e-08
    %v1605 = vadd.f32 %v1567, 1e-08
    %v1606 = vadd.f32 %v1574, 1e-08
    %v1607 = vadd.f32 %v1581, 1e-08
    %v1608 = vadd.f32 %v1588, 1e-08
    %v1609 = vadd.f32 %v1595, 1e-08
    %v1610 = vadd.f32 %v1602, 1e-08
    %v1611 = vrcp.pop %v1603
    %v1612 = vmul.f32 %v778, %v1611
    %v1613 = vrcp.pop %v1604
    %v1614 = vmul.f32 %v779, %v1613
    %v1615 = vrcp.pop %v1605
    %v1616 = vmul.f32 %v780, %v1615
    %v1617 = vrcp.pop %v1606
    %v1618 = vmul.f32 %v781, %v1617
    %v1619 = vrcp.pop %v1607
    %v1620 = vmul.f32 %v782, %v1619
    %v1621 = vrcp.pop %v1608
    %v1622 = vmul.f32 %v783, %v1621
    %v1623 = vrcp.pop %v1609
    %v1624 = vmul.f32 %v784, %v1623
    %v1625 = vrcp.pop %v1610
    %v1626 = vmul.f32 %v785, %v1625
    %vm1635 = vcmask 1041409
    %v1636 = vsel %vm1635, %v1614, %v1612
    %vm1637 = vcmask 1042434
    %v1638 = vsel %vm1637, %v1616, %v1636
    %vm1639 = vcmask 1043459
    %v1640 = vsel %vm1639, %v1618, %v1638
    %vm1641 = vcmask 1044484
    %v1642 = vsel %vm1641, %v1620, %v1640
    %vm1643 = vcmask 1045509
    %v1644 = vsel %vm1643, %v1622, %v1642
    %vm1645 = vcmask 1046534
    %v1646 = vsel %vm1645, %v1624, %v1644
    %vm1647 = vcmask 1047559
    %v1648 = vsel %vm1647, %v1626, %v1646
    %1650 = vxpose.xlu0.b32.start [1/16] %v1648, 128
    %1651 = vxpose.xlu0.b32.cont [2/16] 0.0, 128
    %1652 = vxpose.xlu0.b32.cont [3/16] 0.0, 128
    %1653 = vxpose.xlu0.b32.cont [4/16] 0.0, 128
    %1654 = vxpose.xlu0.b32.cont [5/16] 0.0, 128
    %1655 = vxpose.xlu0.b32.cont [6/16] 0.0, 128
    %1656 = vxpose.xlu0.b32.cont [7/16] 0.0, 128
    %1657 = vxpose.xlu0.b32.cont [8/16] 0.0, 128
    %1658 = vxpose.xlu0.b32.cont [9/16] 0.0, 128
    %1659 = vxpose.xlu0.b32.cont [10/16] 0.0, 128
    %1660 = vxpose.xlu0.b32.cont [11/16] 0.0, 128
    %1661 = vxpose.xlu0.b32.cont [12/16] 0.0, 128
    %1662 = vxpose.xlu0.b32.cont [13/16] 0.0, 128
    %1663 = vxpose.xlu0.b32.cont [14/16] 0.0, 128
    %1664 = vxpose.xlu0.b32.cont [15/16] 0.0, 128
    %1665 = vxpose.xlu0.b32.end [16/16] 0.0, 128
    %v1666 = vpop.trf.xlu0
    %v1667 = vpop.trf.xlu0
    %v1668 = vpop.trf.xlu0
    %v1669 = vpop.trf.xlu0
    %v1670 = vpop.trf.xlu0
    %v1671 = vpop.trf.xlu0
    %v1672 = vpop.trf.xlu0
    %v1673 = vpop.trf.xlu0
    %v1674 = vpop.trf.xlu0
    %v1675 = vpop.trf.xlu0
    %v1676 = vpop.trf.xlu0
    %v1677 = vpop.trf.xlu0
    %v1678 = vpop.trf.xlu0
    %v1679 = vpop.trf.xlu0
    %v1680 = vpop.trf.xlu0
    %v1681 = vpop.trf.xlu0
    %v1682 = vld [vmem:[%s1] sm:$0x1]
    %v1683 = vld [vmem:[%s1 + $0x1] sm:$0x1]
    %v1684 = vlaneseq
    %v1685 = vshrl.u32 %v1684, 7
    %v1686 = vsub.s32 0, %v1685
    %v1687 = vrot.slane %v1682, %v1686
    %v1688 = vlaneseq
    %v1689 = vshrl.u32 %v1688, 7
    %v1690 = vsub.s32 0, %v1689
    %v1691 = vrot.slane %v1683, %v1690
    %vm1692 = vcmp.lt.s32.totalorder %v304, %v1687
    %vm1693 = vcmp.lt.s32.totalorder %v305, %v1687
    %vm1694 = vcmp.lt.s32.totalorder %v304, %v1691
    %vm1695 = vcmp.lt.s32.totalorder %v305, %v1691
    %v1696 = vsel %vm1692, 1, 0
    %v1697 = vsel %vm1693, 1, 0
    %v1698 = vsel %vm1694, 1, 0
    %v1699 = vsel %vm1695, 1, 0
    %1700 = vset.pattern.permute.xlu0 0
    %1701 = vperm.xlu0 %1700, %v1696
    %v1702 = vpop.permute.xlu0 %1701
    %1703 = vset.pattern.permute.xlu0 0
    %1704 = vperm.xlu0 %1703, %v1697
    %v1705 = vpop.permute.xlu0 %1704
    %1706 = vset.pattern.permute.xlu0 0
    %1707 = vperm.xlu0 %1706, %v1698
    %v1708 = vpop.permute.xlu0 %1707
    %1709 = vset.pattern.permute.xlu0 0
    %1710 = vperm.xlu0 %1709, %v1699
    %v1711 = vpop.permute.xlu0 %1710
    %vm1712 = vcmp.eq.s32.totalorder %v1702, 1
    %vm1713 = vcmp.eq.s32.totalorder %v1705, 1
    %vm1714 = vcmp.eq.s32.totalorder %v1708, 1
    %vm1715 = vcmp.eq.s32.totalorder %v1711, 1
    %v1716 = vsel %vm1712, %v1666, -1.0
    %v1717 = vsel %vm1713, %v1667, -1.0
    %v1718 = vsel %vm1714, %v1668, -1.0
    %v1719 = vsel %vm1715, %v1669, -1.0
    %vm1720 = vcmask 64512
    %1721 = vst.msk [vmem:[%s5] sm:$0xff] %vm1720, %v1716
    %1722 = vst.msk [vmem:[%s5 + $0x8] sm:$0xff] %vm1720, %v1717
    %1723 = vst.msk [vmem:[%s5 + $0x10] sm:$0xff] %vm1720, %v1718
    %1724 = vst.msk [vmem:[%s5 + $0x18] sm:$0xff] %vm1720, %v1719
    // Predicated region
    $region34: #{tpu_custom_call.1} parent=1 // pred_check
      _
    $region35: #{tpu_custom_call.1} parent=1 // pred_check_branch
      %1726 = sbr.rel (0) target = $region37
    $region36: #{tpu_custom_call.1} parent=1 // pred_region
      _
    $region37: #{tpu_custom_call.1} parent=1 // pred_fallthru
      _
    // Predicated region
    $region38: #{tpu_custom_call.1} parent=1 // pred_check
      _
    $region39: #{tpu_custom_call.1} parent=1 // pred_check_branch
      %1728 = sbr.rel (0) target = $region41
    $region40: #{tpu_custom_call.1} parent=1 // pred_region
      _
    $region41: #{tpu_custom_call.1} parent=1 // pred_fallthru
      _
    %1729 = vsyncpa [#allocation3], 1
    %1730 = vsyncpa [#allocation5], 1

</llo_original>
